<compile_context>
chip_gen: v5e
topology: v5e:2x2
jax: 0.10.0
libtpu: 0.0.40
codegen_flags: <defaults>
</compile_context>

<pallas_src>
import functools

import jax
import jax.numpy as jnp
from jax import lax
from jax.experimental import pallas as pl
from jax.experimental.pallas import tpu as pltpu


# ----------------------------------------------------------------------------
# Fused kernel: projections + biased/masked attention + output projection
# for W windows per grid step.
# ----------------------------------------------------------------------------
def _fused_window_attn_kernel(x_ref, xr_ref, wq_ref, bq_ref, wkv_ref, bkv_ref,
                              wp_ref, bp_ref, bm_ref, o_ref, *,
                              num_heads, head_dim_padded, nwb, use_bf16_exp):
    H, dp = num_heads, head_dim_padded
    HDp = H * dp
    Wn = x_ref.shape[1]
    C = x_ref.shape[2]

    x = x_ref[0]      # (W*n, C)  bf16 base-window tokens (W windows stacked)
    xr = xr_ref[0]    # (W*m, C)  bf16 receptive-window tokens

    # Projections: scale is already folded into wq/bq; K and V fused in one matmul.
    q = jnp.dot(x, wq_ref[...], preferred_element_type=jnp.float32) + bq_ref[...]
    kv = jnp.dot(xr, wkv_ref[...], preferred_element_type=jnp.float32) + bkv_ref[...]
    qb = q.astype(jnp.bfloat16)       # (W*n, HDp)   HDp = 128 lane-dense
    kvb = kv.astype(jnp.bfloat16)     # (W*m, 2*HDp)

    # VMEM-resident additive (bias + fringe/cross-window mask): pick this grid
    # step's window-block with a dynamic leading-axis view -> no per-step DMA.
    blk = (pl.program_id(0) % nwb) if nwb > 1 else 0
    bm_blk = bm_ref.at[blk]           # Ref-view (H, W*n, W*m), no load yet

    acc = jnp.zeros((Wn, C), jnp.float32)
    for h in range(H):                # small static (unrolled) loop over heads
        qh = qb[:, h * dp:(h + 1) * dp]                # 32-lane aligned slices
        kh = kvb[:, h * dp:(h + 1) * dp]
        vh = kvb[:, HDp + h * dp:HDp + (h + 1) * dp]

        # scores for all W windows at once; cross-window / fringe entries get
        # -1e30 from the additive bias+mask, so softmax matches per-window math.
        s = lax.dot_general(qh, kh, (((1,), (1,)), ((), ())),
                            preferred_element_type=jnp.float32)   # (W*n, W*m)
        s = s + bm_blk[h]

        z = s - jnp.max(s, axis=-1, keepdims=True)
        if use_bf16_exp:              # v6e/v7x EUP supports bf16 exp
            p = jnp.exp(z.astype(jnp.bfloat16))
        else:
            p = jnp.exp(z)
        denom = jnp.sum(p.astype(jnp.float32), axis=-1, keepdims=True)

        ctx = jnp.dot(p.astype(jnp.bfloat16), vh,
                      preferred_element_type=jnp.float32)          # (W*n, dp)
        ctx = ctx * pl.reciprocal(denom, approx=True)              # normalize after PV

        # per-head output-projection accumulation (no lane-axis concat)
        acc = acc + jnp.dot(ctx.astype(jnp.bfloat16),
                            wp_ref[h * dp:(h + 1) * dp, :],
                            preferred_element_type=jnp.float32)

    o_ref[0] = (acc + bp_ref[...]).astype(o_ref.dtype)


def fused_window_attention(x_blk, xr_blk, wq, bq, wkv, bkv, wp, bp, bias_mask,
                           *, num_heads, head_dim_padded, use_bf16_exp):
    """x_blk: (G, W*n, C) bf16   xr_blk: (G, W*m, C) bf16
       bias_mask: (nwb, H, W*n, W*m) f32 additive (bias + 0/-1e30 mask)
       -> out: (G, W*n, C) bf16."""
    G, Wn, C = x_blk.shape
    Wm = xr_blk.shape[1]
    HDp = num_heads * head_dim_padded
    nwb = bias_mask.shape[0]

    kern = functools.partial(_fused_window_attn_kernel, num_heads=num_heads,
                             head_dim_padded=head_dim_padded, nwb=nwb,
                             use_bf16_exp=use_bf16_exp)
    return pl.pallas_call(
        kern,
        grid=(G,),
        in_specs=[
            pl.BlockSpec((1, Wn, C), lambda i: (i, 0, 0)),            # x block
            pl.BlockSpec((1, Wm, C), lambda i: (i, 0, 0)),            # x_ block
            pl.BlockSpec((C, HDp), lambda i: (0, 0)),                 # Wq (resident)
            pl.BlockSpec((1, HDp), lambda i: (0, 0)),                 # bq
            pl.BlockSpec((C, 2 * HDp), lambda i: (0, 0)),             # Wkv (fused)
            pl.BlockSpec((1, 2 * HDp), lambda i: (0, 0)),             # bkv
            pl.BlockSpec((HDp, C), lambda i: (0, 0)),                 # Wproj
            pl.BlockSpec((1, C), lambda i: (0, 0)),                   # bproj
            pl.BlockSpec(bias_mask.shape, lambda i: (0, 0, 0, 0)),    # bias+mask (resident)
        ],
        out_specs=pl.BlockSpec((1, Wn, C), lambda i: (i, 0, 0)),
        out_shape=jax.ShapeDtypeStruct((G, Wn, C), jnp.bfloat16),
        compiler_params=pltpu.CompilerParams(
            dimension_semantics=("parallel",),
            vmem_limit_bytes=48 * 1024 * 1024),
    )(x_blk, xr_blk, wq, bq, wkv, bkv, wp, bp, bias_mask)


# ----------------------------------------------------------------------------
# WindowAttention module (parameters + forward orchestration)
# ----------------------------------------------------------------------------
class WindowAttentionPallas:
    def __init__(self, dim, windowSize, receptiveSize, numHeads, headDim=20,
                 attentionBias=True, qkvBias=True, key=None):
        self.dim = dim
        self.windowSize = windowSize
        self.receptiveSize = receptiveSize
        self.numHeads = numHeads
        self.headDim = headDim
        self.scale = headDim ** (-0.5)
        self.attentionBias = attentionBias

        maxDisparity = windowSize - 1 + (receptiveSize - windowSize) // 2
        self.maxDisparity = maxDisparity

        ks = jax.random.split(key, 10)
        std = 0.02
        H = numHeads
        # trunc_normal_(std=0.02) approximated with plain normal (synthetic init)
        self.relative_position_bias_table = std * jax.random.normal(
            ks[0], (2 * maxDisparity + 1, H), jnp.float32)
        self.cls_bias_sequence_up = std * jax.random.normal(
            ks[1], (1, H, 1, receptiveSize), jnp.float32)
        self.cls_bias_sequence_down = std * jax.random.normal(
            ks[2], (1, H, windowSize, 1), jnp.float32)
        self.cls_bias_self = std * jax.random.normal(
            ks[3], (1, H, 1, 1), jnp.float32)

        coords_x = jnp.arange(windowSize)
        coords_x_ = jnp.arange(receptiveSize) - (receptiveSize - windowSize) // 2
        self.relative_position_index = (
            coords_x[:, None] - coords_x_[None, :] + maxDisparity)

        # Linear layers; weights stored as (in, out) so y = x @ W + b
        wstd = 0.05
        d = headDim
        HD = H * d
        self.q_w = wstd * jax.random.normal(ks[4], (dim, HD), jnp.float32)
        self.q_b = (wstd * jax.random.normal(ks[5], (HD,), jnp.float32)
                    if qkvBias else jnp.zeros((HD,), jnp.float32))
        self.kv_w = wstd * jax.random.normal(ks[6], (dim, 2 * HD), jnp.float32)
        self.kv_b = (wstd * jax.random.normal(ks[7], (2 * HD,), jnp.float32)
                     if qkvBias else jnp.zeros((2 * HD,), jnp.float32))
        self.proj_w = wstd * jax.random.normal(ks[8], (HD, dim), jnp.float32)
        self.proj_b = wstd * jax.random.normal(ks[9], (dim,), jnp.float32)

        # ---- device-dependent knobs (safe fallbacks if the query fails) ----
        try:
            kind = jax.devices()[0].device_kind.lower()
        except Exception:
            kind = ""
        self._big_mxu = ("v6" in kind) or ("v7" in kind) or ("7x" in kind)
        self._use_bf16_exp = self._big_mxu           # bf16 EUP exp on v6e/v7x only
        self._single_tc = ("v5" in kind) or ("v6" in kind)

        # ---- kernel-side parameter copies ----
        # headDim padded to a 32-lane multiple; scale folded into q; K/V fused.
        dp = ((headDim + 31) // 32) * 32
        self.headDimPad = dp
        HDp = H * dp

        def pad_cols(w):   # (dim, H*d) -> (dim, H*dp), zero pad per head
            return jnp.pad(w.reshape(dim, H, d),
                           ((0, 0), (0, 0), (0, dp - d))).reshape(dim, H * dp)

        def pad_vec(b):    # (H*d,) -> (H*dp,)
            return jnp.pad(b.reshape(H, d), ((0, 0), (0, dp - d))).reshape(H * dp)

        self.q_w_kern = pad_cols(self.q_w * self.scale).astype(jnp.bfloat16)
        self.q_b_kern = pad_vec(self.q_b * self.scale).reshape(1, HDp)       # f32
        self.kv_w_kern = jnp.concatenate(
            [pad_cols(self.kv_w[:, :HD]), pad_cols(self.kv_w[:, HD:])],
            axis=1).astype(jnp.bfloat16)                                     # (dim, 2*HDp)
        self.kv_b_kern = jnp.concatenate(
            [pad_vec(self.kv_b[:HD]), pad_vec(self.kv_b[HD:])]).reshape(1, 2 * HDp)
        self.proj_w_kern = jnp.pad(
            self.proj_w.reshape(H, d, dim),
            ((0, 0), (0, dp - d), (0, 0))).reshape(HDp, dim).astype(jnp.bfloat16)
        self.proj_b_kern = self.proj_b.reshape(1, dim)                       # f32

        # bias table assembly hoisted out of the per-call path (params only)
        n, m = windowSize + 1, receptiveSize + 1
        self.attn_bias = (self._full_bias() if attentionBias
                          else jnp.zeros((H, n, m), jnp.float32))
        self._bias_big_cache = {}

        # attnDrop / projDrop have p=0.0 in eval => identity (no-op here).
        # TODO(synk): analysis-mode attention-map saving / grad hooks /
        # getJuiceFlow are training-introspection utilities, not part of the
        # numeric forward pass, and are not translated.

    # ------------------------------------------------------------------
    def _full_bias(self):
        """Assemble (H, 1+N, 1+M) additive bias from the four bias params."""
        H = self.numHeads
        N, M = self.windowSize, self.receptiveSize
        rel = self.relative_position_bias_table[
            self.relative_position_index.reshape(-1)].reshape(N, M, H)
        rel = jnp.transpose(rel, (2, 0, 1))                      # (H, N, M)
        bias = jnp.zeros((H, N + 1, M + 1), jnp.float32)
        bias = bias.at[:, 0, 0].set(self.cls_bias_self[0, :, 0, 0])
        bias = bias.at[:, 0, 1:].set(self.cls_bias_sequence_up[0, :, 0, :])
        bias = bias.at[:, 1:, 0].set(self.cls_bias_sequence_down[0, :, :, 0])
        bias = bias.at[:, 1:, 1:].set(rel)
        return bias

    def _bias_big(self, W):
        cached = self._bias_big_cache.get(W)
        if cached is None:
            cached = jnp.tile(self.attn_bias, (1, W, W))         # (H, W*n, W*m)
            self._bias_big_cache[W] = cached
        return cached

    def _per_window_mask(self, mask_left, mask_right, nW):
        """Replicates the masked_fill logic: (nW, 1+N, 1+M) {0,1} float mask."""
        n, m = mask_left.shape[1], mask_left.shape[2]
        maskCount = min(mask_left.shape[0], nW)
        ml = mask_left[:maskCount]
        mr = mask_right[-maskCount:]
        left_full = jnp.zeros((nW, n, m), jnp.float32).at[:maskCount].set(ml)
        right_full = jnp.zeros((nW, n, m), jnp.float32).at[nW - maskCount:].set(mr)
        return ((left_full > 0.5) | (right_full > 0.5)).astype(jnp.float32)

    def _pick_windows_per_block(self, nW, B_, n, m):
        """Largest divisor W of nW with W*max(n,m) near one MXU tile
        (~128 rows on v5-class chips, ~256 on v6e/v7x); prefer grid >= 2 only
        on multi-TensorCore chips."""
        row_target = 256 if self._big_mxu else 128
        rows = max(n, m)
        cands = [w for w in range(1, nW + 1)
                 if nW % w == 0 and w * rows <= row_target]
        if not cands:
            return 1
        if not self._single_tc:
            multi = [w for w in cands if B_ // w >= 2]
            if multi:
                return max(multi)
        return max(cands)

    # ------------------------------------------------------------------
    def __call__(self, x, x_, mask, nW, windows_per_block=None):
        B_, n, C = x.shape
        m = x_.shape[1]
        H, dp = self.numHeads, self.headDimPad
        mask_left, mask_right = mask

        W = windows_per_block or self._pick_windows_per_block(nW, B_, n, m)
        assert nW % W == 0 and B_ % W == 0, "windows_per_block must divide nW"
        G = B_ // W
        nwb = nW // W

        # contiguous row-major reshapes into window blocks; bf16 kernel I/O
        x_blk = x.reshape(G, W * n, C).astype(jnp.bfloat16)
        xr_blk = x_.reshape(G, W * m, C).astype(jnp.bfloat16)

        # additive bias tiled over the WxW block structure (cached per W)
        bias_big = self._bias_big(W)                                  # (H, W*n, W*m)

        # fringe + cross-window masking as a single ADDITIVE tensor
        # (0 keep / -1e30 masked), pre-summed with the bias; VMEM resident.
        win_mask = self._per_window_mask(mask_left, mask_right, nW)   # (nW, n, m)
        wm = win_mask.reshape(nwb, W, n, m)
        diag = jnp.eye(W, dtype=bool)[None, :, None, :, None]         # (1,W,1,W,1)
        fringe = wm[:, :, :, None, :] > 0.5                           # (nwb,W,n,1,m)
        masked = jnp.where(diag, fringe, True)                        # (nwb,W,n,W,m)
        add_mask = jnp.where(masked, jnp.float32(-1.0e30), jnp.float32(0.0))
        add_mask = add_mask.reshape(nwb, W * n, W * m)
        bias_mask = bias_big[None] + add_mask[:, None]                # (nwb,H,W*n,W*m)
        # TODO(synk): a fully-masked query row would softmax uniformly over all
        # W*m keys here (vs m keys in PyTorch); BolT never produces such rows.

        out_blk = fused_window_attention(
            x_blk, xr_blk,
            self.q_w_kern, self.q_b_kern,
            self.kv_w_kern, self.kv_b_kern,
            self.proj_w_kern, self.proj_b_kern,
            bias_mask,
            num_heads=H, head_dim_padded=dp, use_bf16_exp=self._use_bf16_exp)
        return out_blk.reshape(B_, n, C)          # bf16 (kernel I/O dtype)


# ----------------------------------------------------------------------------
# Pure-JAX f32 reference (mirrors the PyTorch forward exactly) for verification
# ----------------------------------------------------------------------------
def reference_forward(mod, x, x_, mask, nW):
    B_, N1, C = x.shape
    M1 = x_.shape[1]
    B = B_ // nW
    H, d = mod.numHeads, mod.headDim
    mask_left, mask_right = mask

    q = (x.reshape(B_ * N1, C) @ mod.q_w + mod.q_b).reshape(B_, N1, H, d)
    q = q.transpose(0, 2, 1, 3)
    kv = (x_.reshape(B_ * M1, C) @ mod.kv_w + mod.kv_b).reshape(B_, M1, 2 * H * d)
    k = kv[..., :H * d].reshape(B_, M1, H, d).transpose(0, 2, 1, 3)
    v = kv[..., H * d:].reshape(B_, M1, H, d).transpose(0, 2, 1, 3)

    attn = jnp.einsum('bhnd,bhmd->bhnm', q, k) * mod.scale
    attn = attn + mod.attn_bias[None]

    win_mask = mod._per_window_mask(mask_left, mask_right, nW)
    full_mask = jnp.tile(win_mask, (B, 1, 1))[:, None]            # (B_,1,n,m)
    neg = -jnp.finfo(jnp.float32).max
    attn = jnp.where(full_mask > 0.5, neg, attn)

    attn = jax.nn.softmax(attn, axis=-1)
    ctx = jnp.einsum('bhnm,bhmd->bhnd', attn, v)
    ctx = ctx.transpose(0, 2, 1, 3).reshape(B_ * N1, H * d)
    out = ctx @ mod.proj_w + mod.proj_b
    return out.reshape(B_, N1, C)


# ----------------------------------------------------------------------------
if __name__ == "__main__":
    key = jax.random.PRNGKey(0)
    k_param, k_x, k_x_ = jax.random.split(key, 3)

    dim = 32
    windowSize = 8
    receptiveSize = 12
    numHeads = 4
    headDim = 20
    B = 2
    nW = 4
    B_ = B * nW
    n = 1 + windowSize
    m = 1 + receptiveSize

    module = WindowAttentionPallas(dim, windowSize, receptiveSize, numHeads,
                                   headDim=headDim, key=k_param)

    x = jax.random.normal(k_x, (B_, n, dim), jnp.float32)
    x_ = jax.random.normal(k_x_, (B_, m, dim), jnp.float32)

    # deterministic fringe masks (maskCount=2), {0,1} floats; never mask a full row
    maskCount = 2
    mask_left = jnp.zeros((maskCount, n, m), jnp.float32).at[:, :, 1:3].set(1.0)
    mask_right = jnp.zeros((maskCount, n, m), jnp.float32).at[:, :, -2:].set(1.0)

    out = module(x, x_, (mask_left, mask_right), nW)
    out = jax.block_until_ready(out)

    ref = reference_forward(module, x, x_, (mask_left, mask_right), nW)
    assert out.shape == (B_, n, dim)
    # Kernel runs with bf16 MXU operands / bf16 I/O and approx reciprocal, so
    # compare against the pure-f32 reference with a bf16-appropriate tolerance.
    assert jnp.allclose(out.astype(jnp.float32), ref, atol=2.5e-2, rtol=2.5e-2), \
        "mismatch vs reference"

    print("KERNEL_OK")
</pallas_src>

<mosaic_0001>
module attributes {stable_mosaic.version = 11 : i64} {
  func.func @_fused_window_attn_kernel(%arg0: i32, %arg1: memref<1x36x32xbf16, #tpu.memory_space<vmem>>, %arg2: memref<1x52x32xbf16, #tpu.memory_space<vmem>>, %arg3: memref<32x128xbf16, #tpu.memory_space<vmem>>, %arg4: memref<1x128xf32, #tpu.memory_space<vmem>>, %arg5: memref<32x256xbf16, #tpu.memory_space<vmem>>, %arg6: memref<1x256xf32, #tpu.memory_space<vmem>>, %arg7: memref<128x32xbf16, #tpu.memory_space<vmem>>, %arg8: memref<1x32xf32, #tpu.memory_space<vmem>>, %arg9: memref<1x4x36x52xf32, #tpu.memory_space<vmem>>, %arg10: memref<1x36x32xbf16, #tpu.memory_space<vmem>>) attributes {dimension_semantics = [#tpu.dimension_semantics<parallel>], iteration_bounds = array<i64: 2>, scalar_prefetch = 0 : i64, scratch_operands = 0 : i64, tpu.core_type = #tpu.core_type<tc>, window_params = [{transform_indices = @transform_0, window_bounds = array<i64: 1, 36, 32>}, {transform_indices = @transform_1, window_bounds = array<i64: 1, 52, 32>}, {pipeline_mode = #tpu.pipeline_mode<synchronous>, transform_indices = @transform_2, window_bounds = array<i64: 32, 128>}, {pipeline_mode = #tpu.pipeline_mode<synchronous>, transform_indices = @transform_3, window_bounds = array<i64: 1, 128>}, {pipeline_mode = #tpu.pipeline_mode<synchronous>, transform_indices = @transform_4, window_bounds = array<i64: 32, 256>}, {pipeline_mode = #tpu.pipeline_mode<synchronous>, transform_indices = @transform_5, window_bounds = array<i64: 1, 256>}, {pipeline_mode = #tpu.pipeline_mode<synchronous>, transform_indices = @transform_6, window_bounds = array<i64: 128, 32>}, {pipeline_mode = #tpu.pipeline_mode<synchronous>, transform_indices = @transform_7, window_bounds = array<i64: 1, 32>}, {pipeline_mode = #tpu.pipeline_mode<synchronous>, transform_indices = @transform_8, window_bounds = array<i64: 1, 4, 36, 52>}, {transform_indices = @transform_9, window_bounds = array<i64: 1, 36, 32>}]} {
    %c0 = arith.constant 0 : index
    %c0_0 = arith.constant 0 : index
    %c0_1 = arith.constant 0 : index
    %0 = vector.load %arg1[%c0, %c0_0, %c0_1] : memref<1x36x32xbf16, #tpu.memory_space<vmem>>, vector<1x36x32xbf16>
    %1 = vector.shape_cast %0 : vector<1x36x32xbf16> to vector<36x32xbf16>
    %c0_2 = arith.constant 0 : index
    %c0_3 = arith.constant 0 : index
    %c0_4 = arith.constant 0 : index
    %2 = vector.load %arg2[%c0_2, %c0_3, %c0_4] : memref<1x52x32xbf16, #tpu.memory_space<vmem>>, vector<1x52x32xbf16>
    %3 = vector.shape_cast %2 : vector<1x52x32xbf16> to vector<52x32xbf16>
    %c0_5 = arith.constant 0 : index
    %c0_6 = arith.constant 0 : index
    %4 = vector.load %arg3[%c0_5, %c0_6] : memref<32x128xbf16, #tpu.memory_space<vmem>>, vector<32x128xbf16>
    %cst = arith.constant dense<0.000000e+00> : vector<36x128xf32>
    %5 = tpu.matmul %1, %4, %cst {dimension_numbers = #tpu.dot_dimension_numbers<[1], [0], [0], [1], [0, 0, 1, 1], [], []>} : vector<36x32xbf16>, vector<32x128xbf16>, vector<36x128xf32> -> vector<36x128xf32>
    %c0_7 = arith.constant 0 : index
    %c0_8 = arith.constant 0 : index
    %6 = vector.load %arg4[%c0_7, %c0_8] : memref<1x128xf32, #tpu.memory_space<vmem>>, vector<1x128xf32>
    %7 = vector.broadcast %6 : vector<1x128xf32> to vector<36x128xf32>
    %8 = arith.addf %5, %7 : vector<36x128xf32>
    %c0_9 = arith.constant 0 : index
    %c0_10 = arith.constant 0 : index
    %9 = vector.load %arg5[%c0_9, %c0_10] : memref<32x256xbf16, #tpu.memory_space<vmem>>, vector<32x256xbf16>
    %cst_11 = arith.constant dense<0.000000e+00> : vector<52x256xf32>
    %10 = tpu.matmul %3, %9, %cst_11 {dimension_numbers = #tpu.dot_dimension_numbers<[1], [0], [0], [1], [0, 0, 1, 1], [], []>} : vector<52x32xbf16>, vector<32x256xbf16>, vector<52x256xf32> -> vector<52x256xf32>
    %c0_12 = arith.constant 0 : index
    %c0_13 = arith.constant 0 : index
    %11 = vector.load %arg6[%c0_12, %c0_13] : memref<1x256xf32, #tpu.memory_space<vmem>>, vector<1x256xf32>
    %12 = vector.broadcast %11 : vector<1x256xf32> to vector<52x256xf32>
    %13 = arith.addf %10, %12 : vector<52x256xf32>
    %14 = arith.truncf %8 : vector<36x128xf32> to vector<36x128xbf16>
    %15 = arith.truncf %13 : vector<52x256xf32> to vector<52x256xbf16>
    %cst_14 = arith.constant 0.000000e+00 : f32
    %16 = vector.broadcast %cst_14 : f32 to vector<36x32xf32>
    %17 = vector.extract_strided_slice %14 {offsets = [0, 0], sizes = [36, 32], strides = [1, 1]} : vector<36x128xbf16> to vector<36x32xbf16>
    %18 = vector.extract_strided_slice %15 {offsets = [0, 0], sizes = [52, 32], strides = [1, 1]} : vector<52x256xbf16> to vector<52x32xbf16>
    %19 = vector.extract_strided_slice %15 {offsets = [0, 128], sizes = [52, 32], strides = [1, 1]} : vector<52x256xbf16> to vector<52x32xbf16>
    %cst_15 = arith.constant dense<0.000000e+00> : vector<36x52xf32>
    %20 = tpu.matmul %17, %18, %cst_15 {dimension_numbers = #tpu.dot_dimension_numbers<[1], [1], [0], [0], [0, 0, 1, 0], [], []>} : vector<36x32xbf16>, vector<52x32xbf16>, vector<36x52xf32> -> vector<36x52xf32>
    %c0_i32 = arith.constant 0 : i32
    %c0_i32_16 = arith.constant 0 : i32
    %c0_i32_17 = arith.constant 0 : i32
    %c0_i32_18 = arith.constant 0 : i32
    %21 = tpu.memref_slice %arg9[%c0_i32, %c0_i32_16, %c0_i32_17, %c0_i32_18] : memref<1x4x36x52xf32, #tpu.memory_space<vmem>> -> memref<1x4x36x52xf32, #tpu.memory_space<vmem>>
    %22 = tpu.memref_squeeze %21 : memref<1x4x36x52xf32, #tpu.memory_space<vmem>> -> memref<4x36x52xf32, #tpu.memory_space<vmem>>
    %c0_19 = arith.constant 0 : index
    %c0_20 = arith.constant 0 : index
    %c0_21 = arith.constant 0 : index
    %23 = vector.load %22[%c0_19, %c0_20, %c0_21] : memref<4x36x52xf32, #tpu.memory_space<vmem>>, vector<1x36x52xf32>
    %24 = vector.shape_cast %23 : vector<1x36x52xf32> to vector<36x52xf32>
    %25 = arith.addf %20, %24 : vector<36x52xf32>
    %cst_22 = arith.constant dense<0xFF800000> : vector<36xf32>
    %26 = vector.multi_reduction <maximumf>, %25, %cst_22 [1] : vector<36x52xf32> to vector<36xf32>
    %27 = vector.shape_cast %26 : vector<36xf32> to vector<36x1xf32>
    %28 = vector.broadcast %27 : vector<36x1xf32> to vector<36x52xf32>
    %29 = arith.subf %25, %28 : vector<36x52xf32>
    %30 = math.exp %29 : vector<36x52xf32>
    %cst_23 = arith.constant dense<0.000000e+00> : vector<36xf32>
    %31 = vector.multi_reduction <add>, %30, %cst_23 [1] : vector<36x52xf32> to vector<36xf32>
    %32 = vector.shape_cast %31 : vector<36xf32> to vector<36x1xf32>
    %33 = arith.truncf %30 : vector<36x52xf32> to vector<36x52xbf16>
    %cst_24 = arith.constant dense<0.000000e+00> : vector<36x32xf32>
    %34 = tpu.matmul %33, %19, %cst_24 {dimension_numbers = #tpu.dot_dimension_numbers<[1], [0], [0], [1], [0, 0, 1, 1], [], []>} : vector<36x52xbf16>, vector<52x32xbf16>, vector<36x32xf32> -> vector<36x32xf32>
    %35 = tpu.reciprocal %32 {approx = true} : vector<36x1xf32> -> vector<36x1xf32>
    %36 = vector.broadcast %35 : vector<36x1xf32> to vector<36x32xf32>
    %37 = arith.mulf %34, %36 : vector<36x32xf32>
    %38 = arith.truncf %37 : vector<36x32xf32> to vector<36x32xbf16>
    %c0_25 = arith.constant 0 : index
    %c0_26 = arith.constant 0 : index
    %39 = vector.load %arg7[%c0_25, %c0_26] : memref<128x32xbf16, #tpu.memory_space<vmem>>, vector<32x32xbf16>
    %cst_27 = arith.constant dense<0.000000e+00> : vector<36x32xf32>
    %40 = tpu.matmul %38, %39, %cst_27 {dimension_numbers = #tpu.dot_dimension_numbers<[1], [0], [0], [1], [0, 0, 1, 1], [], []>} : vector<36x32xbf16>, vector<32x32xbf16>, vector<36x32xf32> -> vector<36x32xf32>
    %41 = arith.addf %16, %40 : vector<36x32xf32>
    %42 = vector.extract_strided_slice %14 {offsets = [0, 32], sizes = [36, 32], strides = [1, 1]} : vector<36x128xbf16> to vector<36x32xbf16>
    %43 = vector.extract_strided_slice %15 {offsets = [0, 32], sizes = [52, 32], strides = [1, 1]} : vector<52x256xbf16> to vector<52x32xbf16>
    %44 = vector.extract_strided_slice %15 {offsets = [0, 160], sizes = [52, 32], strides = [1, 1]} : vector<52x256xbf16> to vector<52x32xbf16>
    %cst_28 = arith.constant dense<0.000000e+00> : vector<36x52xf32>
    %45 = tpu.matmul %42, %43, %cst_28 {dimension_numbers = #tpu.dot_dimension_numbers<[1], [1], [0], [0], [0, 0, 1, 0], [], []>} : vector<36x32xbf16>, vector<52x32xbf16>, vector<36x52xf32> -> vector<36x52xf32>
    %c0_i32_29 = arith.constant 0 : i32
    %c0_i32_30 = arith.constant 0 : i32
    %c0_i32_31 = arith.constant 0 : i32
    %c0_i32_32 = arith.constant 0 : i32
    %46 = tpu.memref_slice %arg9[%c0_i32_29, %c0_i32_30, %c0_i32_31, %c0_i32_32] : memref<1x4x36x52xf32, #tpu.memory_space<vmem>> -> memref<1x4x36x52xf32, #tpu.memory_space<vmem>>
    %47 = tpu.memref_squeeze %46 : memref<1x4x36x52xf32, #tpu.memory_space<vmem>> -> memref<4x36x52xf32, #tpu.memory_space<vmem>>
    %c1 = arith.constant 1 : index
    %c0_33 = arith.constant 0 : index
    %c0_34 = arith.constant 0 : index
    %48 = vector.load %47[%c1, %c0_33, %c0_34] : memref<4x36x52xf32, #tpu.memory_space<vmem>>, vector<1x36x52xf32>
    %49 = vector.shape_cast %48 : vector<1x36x52xf32> to vector<36x52xf32>
    %50 = arith.addf %45, %49 : vector<36x52xf32>
    %cst_35 = arith.constant dense<0xFF800000> : vector<36xf32>
    %51 = vector.multi_reduction <maximumf>, %50, %cst_35 [1] : vector<36x52xf32> to vector<36xf32>
    %52 = vector.shape_cast %51 : vector<36xf32> to vector<36x1xf32>
    %53 = vector.broadcast %52 : vector<36x1xf32> to vector<36x52xf32>
    %54 = arith.subf %50, %53 : vector<36x52xf32>
    %55 = math.exp %54 : vector<36x52xf32>
    %cst_36 = arith.constant dense<0.000000e+00> : vector<36xf32>
    %56 = vector.multi_reduction <add>, %55, %cst_36 [1] : vector<36x52xf32> to vector<36xf32>
    %57 = vector.shape_cast %56 : vector<36xf32> to vector<36x1xf32>
    %58 = arith.truncf %55 : vector<36x52xf32> to vector<36x52xbf16>
    %cst_37 = arith.constant dense<0.000000e+00> : vector<36x32xf32>
    %59 = tpu.matmul %58, %44, %cst_37 {dimension_numbers = #tpu.dot_dimension_numbers<[1], [0], [0], [1], [0, 0, 1, 1], [], []>} : vector<36x52xbf16>, vector<52x32xbf16>, vector<36x32xf32> -> vector<36x32xf32>
    %60 = tpu.reciprocal %57 {approx = true} : vector<36x1xf32> -> vector<36x1xf32>
    %61 = vector.broadcast %60 : vector<36x1xf32> to vector<36x32xf32>
    %62 = arith.mulf %59, %61 : vector<36x32xf32>
    %63 = arith.truncf %62 : vector<36x32xf32> to vector<36x32xbf16>
    %c32 = arith.constant 32 : index
    %c0_38 = arith.constant 0 : index
    %64 = vector.load %arg7[%c32, %c0_38] : memref<128x32xbf16, #tpu.memory_space<vmem>>, vector<32x32xbf16>
    %cst_39 = arith.constant dense<0.000000e+00> : vector<36x32xf32>
    %65 = tpu.matmul %63, %64, %cst_39 {dimension_numbers = #tpu.dot_dimension_numbers<[1], [0], [0], [1], [0, 0, 1, 1], [], []>} : vector<36x32xbf16>, vector<32x32xbf16>, vector<36x32xf32> -> vector<36x32xf32>
    %66 = arith.addf %41, %65 : vector<36x32xf32>
    %67 = vector.extract_strided_slice %14 {offsets = [0, 64], sizes = [36, 32], strides = [1, 1]} : vector<36x128xbf16> to vector<36x32xbf16>
    %68 = vector.extract_strided_slice %15 {offsets = [0, 64], sizes = [52, 32], strides = [1, 1]} : vector<52x256xbf16> to vector<52x32xbf16>
    %69 = vector.extract_strided_slice %15 {offsets = [0, 192], sizes = [52, 32], strides = [1, 1]} : vector<52x256xbf16> to vector<52x32xbf16>
    %cst_40 = arith.constant dense<0.000000e+00> : vector<36x52xf32>
    %70 = tpu.matmul %67, %68, %cst_40 {dimension_numbers = #tpu.dot_dimension_numbers<[1], [1], [0], [0], [0, 0, 1, 0], [], []>} : vector<36x32xbf16>, vector<52x32xbf16>, vector<36x52xf32> -> vector<36x52xf32>
    %c0_i32_41 = arith.constant 0 : i32
    %c0_i32_42 = arith.constant 0 : i32
    %c0_i32_43 = arith.constant 0 : i32
    %c0_i32_44 = arith.constant 0 : i32
    %71 = tpu.memref_slice %arg9[%c0_i32_41, %c0_i32_42, %c0_i32_43, %c0_i32_44] : memref<1x4x36x52xf32, #tpu.memory_space<vmem>> -> memref<1x4x36x52xf32, #tpu.memory_space<vmem>>
    %72 = tpu.memref_squeeze %71 : memref<1x4x36x52xf32, #tpu.memory_space<vmem>> -> memref<4x36x52xf32, #tpu.memory_space<vmem>>
    %c2 = arith.constant 2 : index
    %c0_45 = arith.constant 0 : index
    %c0_46 = arith.constant 0 : index
    %73 = vector.load %72[%c2, %c0_45, %c0_46] : memref<4x36x52xf32, #tpu.memory_space<vmem>>, vector<1x36x52xf32>
    %74 = vector.shape_cast %73 : vector<1x36x52xf32> to vector<36x52xf32>
    %75 = arith.addf %70, %74 : vector<36x52xf32>
    %cst_47 = arith.constant dense<0xFF800000> : vector<36xf32>
    %76 = vector.multi_reduction <maximumf>, %75, %cst_47 [1] : vector<36x52xf32> to vector<36xf32>
    %77 = vector.shape_cast %76 : vector<36xf32> to vector<36x1xf32>
    %78 = vector.broadcast %77 : vector<36x1xf32> to vector<36x52xf32>
    %79 = arith.subf %75, %78 : vector<36x52xf32>
    %80 = math.exp %79 : vector<36x52xf32>
    %cst_48 = arith.constant dense<0.000000e+00> : vector<36xf32>
    %81 = vector.multi_reduction <add>, %80, %cst_48 [1] : vector<36x52xf32> to vector<36xf32>
    %82 = vector.shape_cast %81 : vector<36xf32> to vector<36x1xf32>
    %83 = arith.truncf %80 : vector<36x52xf32> to vector<36x52xbf16>
    %cst_49 = arith.constant dense<0.000000e+00> : vector<36x32xf32>
    %84 = tpu.matmul %83, %69, %cst_49 {dimension_numbers = #tpu.dot_dimension_numbers<[1], [0], [0], [1], [0, 0, 1, 1], [], []>} : vector<36x52xbf16>, vector<52x32xbf16>, vector<36x32xf32> -> vector<36x32xf32>
    %85 = tpu.reciprocal %82 {approx = true} : vector<36x1xf32> -> vector<36x1xf32>
    %86 = vector.broadcast %85 : vector<36x1xf32> to vector<36x32xf32>
    %87 = arith.mulf %84, %86 : vector<36x32xf32>
    %88 = arith.truncf %87 : vector<36x32xf32> to vector<36x32xbf16>
    %c64 = arith.constant 64 : index
    %c0_50 = arith.constant 0 : index
    %89 = vector.load %arg7[%c64, %c0_50] : memref<128x32xbf16, #tpu.memory_space<vmem>>, vector<32x32xbf16>
    %cst_51 = arith.constant dense<0.000000e+00> : vector<36x32xf32>
    %90 = tpu.matmul %88, %89, %cst_51 {dimension_numbers = #tpu.dot_dimension_numbers<[1], [0], [0], [1], [0, 0, 1, 1], [], []>} : vector<36x32xbf16>, vector<32x32xbf16>, vector<36x32xf32> -> vector<36x32xf32>
    %91 = arith.addf %66, %90 : vector<36x32xf32>
    %92 = vector.extract_strided_slice %14 {offsets = [0, 96], sizes = [36, 32], strides = [1, 1]} : vector<36x128xbf16> to vector<36x32xbf16>
    %93 = vector.extract_strided_slice %15 {offsets = [0, 96], sizes = [52, 32], strides = [1, 1]} : vector<52x256xbf16> to vector<52x32xbf16>
    %94 = vector.extract_strided_slice %15 {offsets = [0, 224], sizes = [52, 32], strides = [1, 1]} : vector<52x256xbf16> to vector<52x32xbf16>
    %cst_52 = arith.constant dense<0.000000e+00> : vector<36x52xf32>
    %95 = tpu.matmul %92, %93, %cst_52 {dimension_numbers = #tpu.dot_dimension_numbers<[1], [1], [0], [0], [0, 0, 1, 0], [], []>} : vector<36x32xbf16>, vector<52x32xbf16>, vector<36x52xf32> -> vector<36x52xf32>
    %c0_i32_53 = arith.constant 0 : i32
    %c0_i32_54 = arith.constant 0 : i32
    %c0_i32_55 = arith.constant 0 : i32
    %c0_i32_56 = arith.constant 0 : i32
    %96 = tpu.memref_slice %arg9[%c0_i32_53, %c0_i32_54, %c0_i32_55, %c0_i32_56] : memref<1x4x36x52xf32, #tpu.memory_space<vmem>> -> memref<1x4x36x52xf32, #tpu.memory_space<vmem>>
    %97 = tpu.memref_squeeze %96 : memref<1x4x36x52xf32, #tpu.memory_space<vmem>> -> memref<4x36x52xf32, #tpu.memory_space<vmem>>
    %c3 = arith.constant 3 : index
    %c0_57 = arith.constant 0 : index
    %c0_58 = arith.constant 0 : index
    %98 = vector.load %97[%c3, %c0_57, %c0_58] : memref<4x36x52xf32, #tpu.memory_space<vmem>>, vector<1x36x52xf32>
    %99 = vector.shape_cast %98 : vector<1x36x52xf32> to vector<36x52xf32>
    %100 = arith.addf %95, %99 : vector<36x52xf32>
    %cst_59 = arith.constant dense<0xFF800000> : vector<36xf32>
    %101 = vector.multi_reduction <maximumf>, %100, %cst_59 [1] : vector<36x52xf32> to vector<36xf32>
    %102 = vector.shape_cast %101 : vector<36xf32> to vector<36x1xf32>
    %103 = vector.broadcast %102 : vector<36x1xf32> to vector<36x52xf32>
    %104 = arith.subf %100, %103 : vector<36x52xf32>
    %105 = math.exp %104 : vector<36x52xf32>
    %cst_60 = arith.constant dense<0.000000e+00> : vector<36xf32>
    %106 = vector.multi_reduction <add>, %105, %cst_60 [1] : vector<36x52xf32> to vector<36xf32>
    %107 = vector.shape_cast %106 : vector<36xf32> to vector<36x1xf32>
    %108 = arith.truncf %105 : vector<36x52xf32> to vector<36x52xbf16>
    %cst_61 = arith.constant dense<0.000000e+00> : vector<36x32xf32>
    %109 = tpu.matmul %108, %94, %cst_61 {dimension_numbers = #tpu.dot_dimension_numbers<[1], [0], [0], [1], [0, 0, 1, 1], [], []>} : vector<36x52xbf16>, vector<52x32xbf16>, vector<36x32xf32> -> vector<36x32xf32>
    %110 = tpu.reciprocal %107 {approx = true} : vector<36x1xf32> -> vector<36x1xf32>
    %111 = vector.broadcast %110 : vector<36x1xf32> to vector<36x32xf32>
    %112 = arith.mulf %109, %111 : vector<36x32xf32>
    %113 = arith.truncf %112 : vector<36x32xf32> to vector<36x32xbf16>
    %c96 = arith.constant 96 : index
    %c0_62 = arith.constant 0 : index
    %114 = vector.load %arg7[%c96, %c0_62] : memref<128x32xbf16, #tpu.memory_space<vmem>>, vector<32x32xbf16>
    %cst_63 = arith.constant dense<0.000000e+00> : vector<36x32xf32>
    %115 = tpu.matmul %113, %114, %cst_63 {dimension_numbers = #tpu.dot_dimension_numbers<[1], [0], [0], [1], [0, 0, 1, 1], [], []>} : vector<36x32xbf16>, vector<32x32xbf16>, vector<36x32xf32> -> vector<36x32xf32>
    %116 = arith.addf %91, %115 : vector<36x32xf32>
    %c0_64 = arith.constant 0 : index
    %c0_65 = arith.constant 0 : index
    %117 = vector.load %arg8[%c0_64, %c0_65] : memref<1x32xf32, #tpu.memory_space<vmem>>, vector<1x32xf32>
    %118 = vector.broadcast %117 : vector<1x32xf32> to vector<36x32xf32>
    %119 = arith.addf %116, %118 : vector<36x32xf32>
    %120 = arith.truncf %119 : vector<36x32xf32> to vector<36x32xbf16>
    %c0_66 = arith.constant 0 : index
    %c0_67 = arith.constant 0 : index
    %c0_68 = arith.constant 0 : index
    %121 = vector.load %arg10[%c0_66, %c0_67, %c0_68] : memref<1x36x32xbf16, #tpu.memory_space<vmem>>, vector<1x36x32xbf16>
    %122 = vector.shape_cast %121 : vector<1x36x32xbf16> to vector<36x32xbf16>
    %123 = vector.shape_cast %120 : vector<36x32xbf16> to vector<1x36x32xbf16>
    tpu.vector_store %arg10[%c0_66, %c0_67, %c0_68], %123 {strides = array<i32>} : memref<1x36x32xbf16, #tpu.memory_space<vmem>>, vector<1x36x32xbf16>,
    return
  }
  func.func @transform_0(%arg0: i32) -> (i32, i32, i32) {
    %c0_i32 = arith.constant 0 : i32
    %c0_i32_0 = arith.constant 0 : i32
    %c0_i32_1 = arith.constant 0 : i32
    return %arg0, %c0_i32, %c0_i32_0 : i32, i32, i32
  }
  func.func @transform_1(%arg0: i32) -> (i32, i32, i32) {
    %c0_i32 = arith.constant 0 : i32
    %c0_i32_0 = arith.constant 0 : i32
    %c0_i32_1 = arith.constant 0 : i32
    return %arg0, %c0_i32, %c0_i32_0 : i32, i32, i32
  }
  func.func @transform_2(%arg0: i32) -> (i32, i32) {
    %c0_i32 = arith.constant 0 : i32
    %c0_i32_0 = arith.constant 0 : i32
    %c0_i32_1 = arith.constant 0 : i32
    return %c0_i32, %c0_i32_0 : i32, i32
  }
  func.func @transform_3(%arg0: i32) -> (i32, i32) {
    %c0_i32 = arith.constant 0 : i32
    %c0_i32_0 = arith.constant 0 : i32
    %c0_i32_1 = arith.constant 0 : i32
    return %c0_i32, %c0_i32_0 : i32, i32
  }
  func.func @transform_4(%arg0: i32) -> (i32, i32) {
    %c0_i32 = arith.constant 0 : i32
    %c0_i32_0 = arith.constant 0 : i32
    %c0_i32_1 = arith.constant 0 : i32
    return %c0_i32, %c0_i32_0 : i32, i32
  }
  func.func @transform_5(%arg0: i32) -> (i32, i32) {
    %c0_i32 = arith.constant 0 : i32
    %c0_i32_0 = arith.constant 0 : i32
    %c0_i32_1 = arith.constant 0 : i32
    return %c0_i32, %c0_i32_0 : i32, i32
  }
  func.func @transform_6(%arg0: i32) -> (i32, i32) {
    %c0_i32 = arith.constant 0 : i32
    %c0_i32_0 = arith.constant 0 : i32
    %c0_i32_1 = arith.constant 0 : i32
    return %c0_i32, %c0_i32_0 : i32, i32
  }
  func.func @transform_7(%arg0: i32) -> (i32, i32) {
    %c0_i32 = arith.constant 0 : i32
    %c0_i32_0 = arith.constant 0 : i32
    %c0_i32_1 = arith.constant 0 : i32
    return %c0_i32, %c0_i32_0 : i32, i32
  }
  func.func @transform_8(%arg0: i32) -> (i32, i32, i32, i32) {
    %c0_i32 = arith.constant 0 : i32
    %c0_i32_0 = arith.constant 0 : i32
    %c0_i32_1 = arith.constant 0 : i32
    %c0_i32_2 = arith.constant 0 : i32
    %c0_i32_3 = arith.constant 0 : i32
    return %c0_i32, %c0_i32_0, %c0_i32_1, %c0_i32_2 : i32, i32, i32, i32
  }
  func.func @transform_9(%arg0: i32) -> (i32, i32, i32) {
    %c0_i32 = arith.constant 0 : i32
    %c0_i32_0 = arith.constant 0 : i32
    %c0_i32_1 = arith.constant 0 : i32
    return %arg0, %c0_i32, %c0_i32_0 : i32, i32, i32
  }
}

</mosaic_0001>

<llo_original>
// kernel: tpu_custom_call.1
$region0: #{tpu_custom_call.1}
  #allocation0 [shape = 'u32[]', space=smem, size = 0x4, offset = 0x4, fixed_abs, tag = 'smem constant byte address 0x4 - core index']
  #allocation1 [shape = 'u32[72,128]{1,0:T(1,128)}', space=vmem, size = 0x9000, scoped, tag = 'internal scratch']
  %s0 = inlined_call_operand.vmem [shape: bf16[2,36,32], index: 0, kind: input, shape index: {}]
  %s1 = inlined_call_operand.vmem [shape: bf16[2,52,32], index: 1, kind: input, shape index: {}]
  %s2 = inlined_call_operand.vmem [shape: bf16[32,128], index: 2, kind: input, shape index: {}]
  %s3 = inlined_call_operand.vmem [shape: f32[1,128], index: 3, kind: input, shape index: {}]
  %s4 = inlined_call_operand.vmem [shape: bf16[32,256], index: 4, kind: input, shape index: {}]
  %s5 = inlined_call_operand.vmem [shape: f32[1,256], index: 5, kind: input, shape index: {}]
  %s6 = inlined_call_operand.vmem [shape: bf16[128,32], index: 6, kind: input, shape index: {}]
  %s7 = inlined_call_operand.vmem [shape: f32[1,32], index: 7, kind: input, shape index: {}]
  %s8 = inlined_call_operand.vmem [shape: f32[1,4,36,52], index: 8, kind: input, shape index: {}]
  %s9 = inlined_call_operand.vmem [shape: bf16[2,36,32], index: 9, kind: output, shape index: {}]
  %s10 = sld [smem:[#allocation0]]
  $region69: #{tpu_custom_call.1} parent=0
    _
  %s12 = ssub.s32 1, %s10
  %s13 = scalar_select 0, %s12, %s10
  loop: start=0, step=1, limit=4
  $region2: #{tpu_custom_call.1} parent=0 // loop_pre_header
    _
  $region3: #{tpu_custom_call.1} parent=0 // loop_header
    %s15 = sphi 0, %s19
    %p16 = scmp.ge.s32.totalorder %s15, 4
    %s25 = sphi 0, %s27
    %s28 = sphi 0, %s25
    %s29 = sphi 0, %s28
    %s45 = sphi 0, %s29
    %s51 = sphi 0, %s53
    %s54 = sphi 0, %s51
    %s55 = sphi 0, %s54
    %s71 = sphi 0, %s55
    %s75 = sphi 0, %s75
    %s77 = sphi 0, %s75
    %s78 = sphi 0, %s77
    %s92 = sphi 0, %s78
    %s96 = sphi 0, %s96
    %s98 = sphi 0, %s96
    %s99 = sphi 0, %s98
    %s113 = sphi 0, %s99
    %s117 = sphi 0, %s117
    %s119 = sphi 0, %s117
    %s120 = sphi 0, %s119
    %s134 = sphi 0, %s120
    %s138 = sphi 0, %s138
    %s140 = sphi 0, %s138
    %s141 = sphi 0, %s140
    %s155 = sphi 0, %s141
    %s159 = sphi 0, %s159
    %s161 = sphi 0, %s159
    %s162 = sphi 0, %s161
    %s176 = sphi 0, %s162
    %s180 = sphi 0, %s180
    %s182 = sphi 0, %s180
    %s183 = sphi 0, %s182
    %s197 = sphi 0, %s183
    %s201 = sphi 0, %s201
    %s203 = sphi 0, %s201
    %s204 = sphi 0, %s203
    %s218 = sphi 0, %s204
    %s224 = sphi 0, %s226
    %s227 = sphi 0, %s224
    %s228 = sphi 0, %s227
    %s244 = sphi 0, %s228
  $region4: #{tpu_custom_call.1} parent=0 // loop_header_branch
    %18 = sbr.rel (%p16) target = $region8
  $region5: #{tpu_custom_call.1} parent=0 // loop_body
    %s20 = ssub.s32 %s15, 1
    %s21 = ssub.s32 %s15, 2
    %s22 = sadd.s32 %s15, 1
    %s23 = ssub.s32 %s15, %s22
    %p24 = scmp.eq.s32.totalorder %s23, 0
    %s26 = sadd.s32 %s25, 1
    %s27 = scalar_select %p24, %s25, %s26
    %p30 = pneg %p24
    %p31 = scmp.eq.s32.totalorder %s15, 1
    %p32 = por %p30, %p31
    %p33 = scmp.ne.s32.totalorder %s25, %s28
    %p34 = scmp.eq.s32.totalorder %s15, 0
    %p35 = por %p33, %p34
    %p36 = scmp.ne.s32.totalorder %s25, %s28
    %p37 = scmp.eq.s32.totalorder %s20, 1
    %p38 = por %p36, %p37
    %p39 = scmp.ne.s32.totalorder %s28, %s29
    %p40 = scmp.eq.s32.totalorder %s20, 0
    %p41 = por %p39, %p40
    %p42 = scmp.ne.s32.totalorder %s28, %s29
    %p43 = scmp.eq.s32.totalorder %s21, 1
    %p44 = por %p42, %p43
    %p46 = scmp.ne.s32.totalorder %s29, %s45
    %p47 = scmp.eq.s32.totalorder %s21, 0
    %p48 = por %p46, %p47
    %s49 = ssub.s32 %s15, %s22
    %p50 = scmp.eq.s32.totalorder %s49, 0
    %s52 = sadd.s32 %s51, 1
    %s53 = scalar_select %p50, %s51, %s52
    %p56 = pneg %p50
    %p57 = scmp.eq.s32.totalorder %s15, 1
    %p58 = por %p56, %p57
    %p59 = scmp.ne.s32.totalorder %s51, %s54
    %p60 = scmp.eq.s32.totalorder %s15, 0
    %p61 = por %p59, %p60
    %p62 = scmp.ne.s32.totalorder %s51, %s54
    %p63 = scmp.eq.s32.totalorder %s20, 1
    %p64 = por %p62, %p63
    %p65 = scmp.ne.s32.totalorder %s54, %s55
    %p66 = scmp.eq.s32.totalorder %s20, 0
    %p67 = por %p65, %p66
    %p68 = scmp.ne.s32.totalorder %s54, %s55
    %p69 = scmp.eq.s32.totalorder %s21, 1
    %p70 = por %p68, %p69
    %p72 = scmp.ne.s32.totalorder %s55, %s71
    %p73 = scmp.eq.s32.totalorder %s21, 0
    %p74 = por %p72, %p73
    %s76 = sadd.s32 %s75, 1
    %p79 = scmp.eq.s32.totalorder %s15, 1
    %p80 = scmp.ne.s32.totalorder %s75, %s77
    %p81 = scmp.eq.s32.totalorder %s15, 0
    %p82 = por %p80, %p81
    %p83 = scmp.ne.s32.totalorder %s75, %s77
    %p84 = scmp.eq.s32.totalorder %s20, 1
    %p85 = por %p83, %p84
    %p86 = scmp.ne.s32.totalorder %s77, %s78
    %p87 = scmp.eq.s32.totalorder %s20, 0
    %p88 = por %p86, %p87
    %p89 = scmp.ne.s32.totalorder %s77, %s78
    %p90 = scmp.eq.s32.totalorder %s21, 1
    %p91 = por %p89, %p90
    %p93 = scmp.ne.s32.totalorder %s78, %s92
    %p94 = scmp.eq.s32.totalorder %s21, 0
    %p95 = por %p93, %p94
    %s97 = sadd.s32 %s96, 1
    %p100 = scmp.eq.s32.totalorder %s15, 1
    %p101 = scmp.ne.s32.totalorder %s96, %s98
    %p102 = scmp.eq.s32.totalorder %s15, 0
    %p103 = por %p101, %p102
    %p104 = scmp.ne.s32.totalorder %s96, %s98
    %p105 = scmp.eq.s32.totalorder %s20, 1
    %p106 = por %p104, %p105
    %p107 = scmp.ne.s32.totalorder %s98, %s99
    %p108 = scmp.eq.s32.totalorder %s20, 0
    %p109 = por %p107, %p108
    %p110 = scmp.ne.s32.totalorder %s98, %s99
    %p111 = scmp.eq.s32.totalorder %s21, 1
    %p112 = por %p110, %p111
    %p114 = scmp.ne.s32.totalorder %s99, %s113
    %p115 = scmp.eq.s32.totalorder %s21, 0
    %p116 = por %p114, %p115
    %s118 = sadd.s32 %s117, 1
    %p121 = scmp.eq.s32.totalorder %s15, 1
    %p122 = scmp.ne.s32.totalorder %s117, %s119
    %p123 = scmp.eq.s32.totalorder %s15, 0
    %p124 = por %p122, %p123
    %p125 = scmp.ne.s32.totalorder %s117, %s119
    %p126 = scmp.eq.s32.totalorder %s20, 1
    %p127 = por %p125, %p126
    %p128 = scmp.ne.s32.totalorder %s119, %s120
    %p129 = scmp.eq.s32.totalorder %s20, 0
    %p130 = por %p128, %p129
    %p131 = scmp.ne.s32.totalorder %s119, %s120
    %p132 = scmp.eq.s32.totalorder %s21, 1
    %p133 = por %p131, %p132
    %p135 = scmp.ne.s32.totalorder %s120, %s134
    %p136 = scmp.eq.s32.totalorder %s21, 0
    %p137 = por %p135, %p136
    %s139 = sadd.s32 %s138, 1
    %p142 = scmp.eq.s32.totalorder %s15, 1
    %p143 = scmp.ne.s32.totalorder %s138, %s140
    %p144 = scmp.eq.s32.totalorder %s15, 0
    %p145 = por %p143, %p144
    %p146 = scmp.ne.s32.totalorder %s138, %s140
    %p147 = scmp.eq.s32.totalorder %s20, 1
    %p148 = por %p146, %p147
    %p149 = scmp.ne.s32.totalorder %s140, %s141
    %p150 = scmp.eq.s32.totalorder %s20, 0
    %p151 = por %p149, %p150
    %p152 = scmp.ne.s32.totalorder %s140, %s141
    %p153 = scmp.eq.s32.totalorder %s21, 1
    %p154 = por %p152, %p153
    %p156 = scmp.ne.s32.totalorder %s141, %s155
    %p157 = scmp.eq.s32.totalorder %s21, 0
    %p158 = por %p156, %p157
    %s160 = sadd.s32 %s159, 1
    %p163 = scmp.eq.s32.totalorder %s15, 1
    %p164 = scmp.ne.s32.totalorder %s159, %s161
    %p165 = scmp.eq.s32.totalorder %s15, 0
    %p166 = por %p164, %p165
    %p167 = scmp.ne.s32.totalorder %s159, %s161
    %p168 = scmp.eq.s32.totalorder %s20, 1
    %p169 = por %p167, %p168
    %p170 = scmp.ne.s32.totalorder %s161, %s162
    %p171 = scmp.eq.s32.totalorder %s20, 0
    %p172 = por %p170, %p171
    %p173 = scmp.ne.s32.totalorder %s161, %s162
    %p174 = scmp.eq.s32.totalorder %s21, 1
    %p175 = por %p173, %p174
    %p177 = scmp.ne.s32.totalorder %s162, %s176
    %p178 = scmp.eq.s32.totalorder %s21, 0
    %p179 = por %p177, %p178
    %s181 = sadd.s32 %s180, 1
    %p184 = scmp.eq.s32.totalorder %s15, 1
    %p185 = scmp.ne.s32.totalorder %s180, %s182
    %p186 = scmp.eq.s32.totalorder %s15, 0
    %p187 = por %p185, %p186
    %p188 = scmp.ne.s32.totalorder %s180, %s182
    %p189 = scmp.eq.s32.totalorder %s20, 1
    %p190 = por %p188, %p189
    %p191 = scmp.ne.s32.totalorder %s182, %s183
    %p192 = scmp.eq.s32.totalorder %s20, 0
    %p193 = por %p191, %p192
    %p194 = scmp.ne.s32.totalorder %s182, %s183
    %p195 = scmp.eq.s32.totalorder %s21, 1
    %p196 = por %p194, %p195
    %p198 = scmp.ne.s32.totalorder %s183, %s197
    %p199 = scmp.eq.s32.totalorder %s21, 0
    %p200 = por %p198, %p199
    %s202 = sadd.s32 %s201, 1
    %p205 = scmp.eq.s32.totalorder %s15, 1
    %p206 = scmp.ne.s32.totalorder %s201, %s203
    %p207 = scmp.eq.s32.totalorder %s15, 0
    %p208 = por %p206, %p207
    %p209 = scmp.ne.s32.totalorder %s201, %s203
    %p210 = scmp.eq.s32.totalorder %s20, 1
    %p211 = por %p209, %p210
    %p212 = scmp.ne.s32.totalorder %s203, %s204
    %p213 = scmp.eq.s32.totalorder %s20, 0
    %p214 = por %p212, %p213
    %p215 = scmp.ne.s32.totalorder %s203, %s204
    %p216 = scmp.eq.s32.totalorder %s21, 1
    %p217 = por %p215, %p216
    %p219 = scmp.ne.s32.totalorder %s204, %s218
    %p220 = scmp.eq.s32.totalorder %s21, 0
    %p221 = por %p219, %p220
    %s222 = ssub.s32 %s15, %s22
    %p223 = scmp.eq.s32.totalorder %s222, 0
    %s225 = sadd.s32 %s224, 1
    %s226 = scalar_select %p223, %s224, %s225
    %p229 = pneg %p223
    %p230 = scmp.eq.s32.totalorder %s15, 1
    %p231 = por %p229, %p230
    %p232 = scmp.ne.s32.totalorder %s224, %s227
    %p233 = scmp.eq.s32.totalorder %s15, 0
    %p234 = por %p232, %p233
    %p235 = scmp.ne.s32.totalorder %s224, %s227
    %p236 = scmp.eq.s32.totalorder %s20, 1
    %p237 = por %p235, %p236
    %p238 = scmp.ne.s32.totalorder %s227, %s228
    %p239 = scmp.eq.s32.totalorder %s20, 0
    %p240 = por %p238, %p239
    %p241 = scmp.ne.s32.totalorder %s227, %s228
    %p242 = scmp.eq.s32.totalorder %s21, 1
    %p243 = por %p241, %p242
    %p245 = scmp.ne.s32.totalorder %s228, %s244
    %p246 = scmp.eq.s32.totalorder %s21, 0
    %p247 = por %p245, %p246
    %p248 = scmp.le.s32.totalorder 1, %s15
    %p249 = scmp.lt.s32.totalorder %s15, 3
    %p250 = pnand %p248, %p249
    %p251 = pneg %p250
    // Predicated region
    $region9: #{tpu_custom_call.1} parent=5 // pred_check
      _
    $region10: #{tpu_custom_call.1} parent=5 // pred_check_branch
      %253 = sbr.rel (%p250) target = $region12
    $region11: #{tpu_custom_call.1} parent=5 // pred_region
      %s254 = ssub.s32 %s15, 1
      // Predicated region
      $region13: #{tpu_custom_call.1} parent=11 // pred_check
        %p255 = pneg %p88
      $region14: #{tpu_custom_call.1} parent=11 // pred_check_branch
        %257 = sbr.rel (%p255) target = $region16
      $region15: #{tpu_custom_call.1} parent=11 // pred_region
        _
      $region16: #{tpu_custom_call.1} parent=11 // pred_fallthru
        _
      // Predicated region
      $region17: #{tpu_custom_call.1} parent=11 // pred_check
        %p258 = pneg %p109
      $region18: #{tpu_custom_call.1} parent=11 // pred_check_branch
        %260 = sbr.rel (%p258) target = $region20
      $region19: #{tpu_custom_call.1} parent=11 // pred_region
        _
      $region20: #{tpu_custom_call.1} parent=11 // pred_fallthru
        _
      // Predicated region
      $region21: #{tpu_custom_call.1} parent=11 // pred_check
        %p261 = pneg %p130
      $region22: #{tpu_custom_call.1} parent=11 // pred_check_branch
        %263 = sbr.rel (%p261) target = $region24
      $region23: #{tpu_custom_call.1} parent=11 // pred_region
        _
      $region24: #{tpu_custom_call.1} parent=11 // pred_fallthru
        _
      // Predicated region
      $region25: #{tpu_custom_call.1} parent=11 // pred_check
        %p264 = pneg %p151
      $region26: #{tpu_custom_call.1} parent=11 // pred_check_branch
        %266 = sbr.rel (%p264) target = $region28
      $region27: #{tpu_custom_call.1} parent=11 // pred_region
        _
      $region28: #{tpu_custom_call.1} parent=11 // pred_fallthru
        _
      // Predicated region
      $region29: #{tpu_custom_call.1} parent=11 // pred_check
        %p267 = pneg %p172
      $region30: #{tpu_custom_call.1} parent=11 // pred_check_branch
        %269 = sbr.rel (%p267) target = $region32
      $region31: #{tpu_custom_call.1} parent=11 // pred_region
        _
      $region32: #{tpu_custom_call.1} parent=11 // pred_fallthru
        _
      // Predicated region
      $region33: #{tpu_custom_call.1} parent=11 // pred_check
        %p270 = pneg %p193
      $region34: #{tpu_custom_call.1} parent=11 // pred_check_branch
        %272 = sbr.rel (%p270) target = $region36
      $region35: #{tpu_custom_call.1} parent=11 // pred_region
        _
      $region36: #{tpu_custom_call.1} parent=11 // pred_fallthru
        _
      // Predicated region
      $region37: #{tpu_custom_call.1} parent=11 // pred_check
        %p273 = pneg %p214
      $region38: #{tpu_custom_call.1} parent=11 // pred_check_branch
        %275 = sbr.rel (%p273) target = $region40
      $region39: #{tpu_custom_call.1} parent=11 // pred_region
        _
      $region40: #{tpu_custom_call.1} parent=11 // pred_fallthru
        _
    $region12: #{tpu_custom_call.1} parent=5 // pred_fallthru
      _
    %p276 = scmp.lt.s32.totalorder %s15, 2
    // Predicated region
    $region41: #{tpu_custom_call.1} parent=5 // pred_check
      %p277 = pneg %p276
    $region42: #{tpu_custom_call.1} parent=5 // pred_check_branch
      %279 = sbr.rel (%p277) target = $region44
    $region43: #{tpu_custom_call.1} parent=5 // pred_region
      // Predicated region
      $region45: #{tpu_custom_call.1} parent=43 // pred_check
        %p280 = pneg %p35
      $region46: #{tpu_custom_call.1} parent=43 // pred_check_branch
        %282 = sbr.rel (%p280) target = $region48
      $region47: #{tpu_custom_call.1} parent=43 // pred_region
        %p283 = scmp.lt.s32.totalorder %s15, 1
        %s284 = scalar_select %p283, %s15, 1
        %s285 = smul.addr %s284, 5
        %s286 = smul.addr %s285, 4
        %s287 = scalar_lea.vmem %s0, %s286
      $region48: #{tpu_custom_call.1} parent=43 // pred_fallthru
        _
      // Predicated region
      $region49: #{tpu_custom_call.1} parent=43 // pred_check
        %p288 = pneg %p61
      $region50: #{tpu_custom_call.1} parent=43 // pred_check_branch
        %290 = sbr.rel (%p288) target = $region52
      $region51: #{tpu_custom_call.1} parent=43 // pred_region
        %p291 = scmp.lt.s32.totalorder %s15, 1
        %s292 = scalar_select %p291, %s15, 1
        %s293 = smul.addr %s292, 7
        %s294 = smul.addr %s293, 4
        %s295 = scalar_lea.vmem %s1, %s294
      $region52: #{tpu_custom_call.1} parent=43 // pred_fallthru
        _
    $region44: #{tpu_custom_call.1} parent=5 // pred_fallthru
      _
    %p296 = scmp.le.s32.totalorder 1, %s15
    %p297 = scmp.lt.s32.totalorder %s15, 3
    %p298 = pnand %p296, %p297
    %p299 = pneg %p298
    // Predicated region
    $region53: #{tpu_custom_call.1} parent=5 // pred_check
      _
    $region54: #{tpu_custom_call.1} parent=5 // pred_check_branch
      %301 = sbr.rel (%p298) target = $region56
    $region55: #{tpu_custom_call.1} parent=5 // pred_region
      %s302 = ssub.s32 %s15, 1
      %p303 = scmp.lt.s32.totalorder %s20, 1
      %s304 = scalar_select %p303, %s20, 1
      %s305 = smul.addr %s304, 5
      %s306 = smul.addr %s305, 4
      %s307 = scalar_lea.vmem %s0, %s306
      %p308 = pneg %p41
      %p309 = pneg %p38
      %p310 = scmp.lt.s32.totalorder %s20, 1
      %s311 = scalar_select %p310, %s20, 1
      %s312 = smul.addr %s311, 7
      %s313 = smul.addr %s312, 4
      %s314 = scalar_lea.vmem %s1, %s313
      %p315 = pneg %p67
      %p316 = pneg %p64
      %p317 = pneg %p88
      %p318 = pneg %p85
      %p319 = pneg %p109
      %p320 = pneg %p106
      %p321 = pneg %p130
      %p322 = pneg %p127
      %p323 = pneg %p151
      %p324 = pneg %p148
      %p325 = pneg %p172
      %p326 = pneg %p169
      %p327 = pneg %p193
      %p328 = pneg %p190
      %p329 = pneg %p214
      %p330 = pneg %p211
      %p331 = pneg %p240
      %p332 = pneg %p237
      %p333 = scmp.lt.s32.totalorder %s20, 1
      %s334 = scalar_select %p333, %s20, 1
      %s335 = smul.addr %s334, 5
      %s336 = smul.addr %s335, 4
      %s337 = scalar_lea.vmem %s9, %s336
      %p338 = scmp.lt.s32.totalorder %s20, 1
      %s339 = scalar_select %p338, %s20, 1
      %s340 = smul.addr %s339, 5
      %s341 = smul.addr %s340, 4
      %s342 = scalar_lea.vmem %s0, %s341
      %p343 = scmp.lt.s32.totalorder %s20, 1
      %s344 = scalar_select %p343, %s20, 1
      %s345 = smul.addr %s344, 7
      %s346 = smul.addr %s345, 4
      %s347 = scalar_lea.vmem %s1, %s346
      %p348 = scmp.lt.s32.totalorder %s20, 1
      %s349 = scalar_select %p348, %s20, 1
      %s350 = smul.addr %s349, 5
      %s351 = smul.addr %s350, 4
      %s352 = scalar_lea.vmem %s9, %s351
      %v354 = vld [vmem:[%s342] sm:$0xf]
      %v355 = vld [vmem:[%s342 + $0x4] sm:$0xf]
      %v356 = vld [vmem:[%s342 + $0x8] sm:$0xf]
      %v357 = vld [vmem:[%s342 + $0xc] sm:$0xf]
      %v358 = vld [vmem:[%s342 + $0x10] sm:$0x3]
      %v359 = vld [vmem:[%s347] sm:$0xf]
      %v360 = vld [vmem:[%s347 + $0x4] sm:$0xf]
      %v361 = vld [vmem:[%s347 + $0x8] sm:$0xf]
      %v362 = vld [vmem:[%s347 + $0xc] sm:$0xf]
      %v363 = vld [vmem:[%s347 + $0x10] sm:$0xf]
      %v364 = vld [vmem:[%s347 + $0x14] sm:$0xf]
      %v365 = vld [vmem:[%s347 + $0x18] sm:$0x3]
      %v366 = vld [vmem:[%s2] sm:$0xf]
      %v367 = vld [vmem:[%s2 + $0x4] sm:$0xf]
      %v368 = vld [vmem:[%s2 + $0x8] sm:$0xf]
      %v369 = vld [vmem:[%s2 + $0xc] sm:$0xf]
      %v370 = vld [vmem:[%s3] sm:$0x1]
      %v372 = vperm.slane %v370, 0
      %v379 = vunpack.c.l.b16 %v354
      %v380 = vunpack.c.l.b16 %v355
      %v381 = vunpack.c.l.b16 %v356
      %v382 = vunpack.c.l.b16 %v357
      %v383 = vunpack.c.l.b16 %v358
      %v384 = vpack.c.b16 %v380, %v379
      %v385 = vpack.c.b16 %v382, %v381
      %v386 = vpack.c.b16 %v383, %v383
      %v391 = vunpack.c.l.b16 %v366
      %v392 = vunpack.c.l.b16 %v367
      %v393 = vunpack.c.l.b16 %v368
      %v394 = vunpack.c.l.b16 %v369
      %v395 = vpack.c.b16 %v392, %v391
      %v396 = vpack.c.b16 %v394, %v393
      %vm399 = vcmask 261120
      %v401 = vsel %vm399, %v384, 0
      %v404 = vsel %vm399, %v385, 0
      %v407 = vsel %vm399, %v386, 0
      %409 = vmatpush.bf16.msra.mxu0 0
      %410 = vmatpush.bf16.msra.mxu0 0
      %411 = vmatpush.bf16.msra.mxu0 0
      %412 = vmatpush.bf16.msra.mxu0 0
      %413 = vmatpush.bf16.msra.mxu0 0
      %414 = vmatpush.bf16.msra.mxu0 0
      %415 = vmatpush.bf16.msra.mxu0 %v396
      %416 = vmatpush.bf16.msra.mxu0 %v395
      %417 = vmatmul.bf16.gmra.mxu0 %v401
      %v418 = vpop.f32.mrf.mxu0
      %v419 = vadd.f32 %v372, %v418
      %v420 = vpop.f32.mrf.mxu0
      %v421 = vadd.f32 %v372, %v420
      %422 = vmatmul.bf16.gmra.mxu0 %v404
      %v423 = vpop.f32.mrf.mxu0
      %v424 = vadd.f32 %v372, %v423
      %v425 = vpop.f32.mrf.mxu0
      %v426 = vadd.f32 %v372, %v425
      %427 = vmatmul.bf16.gmra.mxu0 %v407
      %v428 = vpop.f32.mrf.mxu0
      %v429 = vadd.f32 %v372, %v428
      %v430 = vpop.f32.mrf.mxu0
      %431 = vdwg.mxu0
      %v432 = vld [vmem:[%s4] sm:$0xff]
      %v433 = vld [vmem:[%s4 + $0x8] sm:$0xff]
      %v434 = vld [vmem:[%s4 + $0x10] sm:$0xff]
      %v435 = vld [vmem:[%s4 + $0x18] sm:$0xff]
      %v436 = vld [vmem:[%s5] sm:$0x3]
      %v438 = vperm.slane %v436, 0
      %v439 = vperm.slane %v436, 1
      %v449 = vunpack.c.l.b16 %v359
      %v450 = vunpack.c.l.b16 %v360
      %v451 = vunpack.c.l.b16 %v361
      %v452 = vunpack.c.l.b16 %v362
      %v453 = vunpack.c.l.b16 %v363
      %v454 = vunpack.c.l.b16 %v364
      %v455 = vunpack.c.l.b16 %v365
      %v456 = vpack.c.b16 %v450, %v449
      %v457 = vpack.c.b16 %v452, %v451
      %v458 = vpack.c.b16 %v454, %v453
      %v459 = vpack.c.b16 %v455, %v455
      %v464 = vunpack.c.l.b16 %v432
      %v465 = vunpack.c.h.b16 %v432
      %v466 = vunpack.c.l.b16 %v433
      %v467 = vunpack.c.h.b16 %v433
      %v468 = vunpack.c.l.b16 %v434
      %v469 = vunpack.c.h.b16 %v434
      %v470 = vunpack.c.l.b16 %v435
      %v471 = vunpack.c.h.b16 %v435
      %v472 = vpack.c.b16 %v466, %v464
      %v473 = vpack.c.b16 %v467, %v465
      %v474 = vpack.c.b16 %v470, %v468
      %v475 = vpack.c.b16 %v471, %v469
      %v481 = vsel %vm399, %v456, 0
      %v484 = vsel %vm399, %v457, 0
      %v487 = vsel %vm399, %v458, 0
      %v490 = vsel %vm399, %v459, 0
      %492 = vmatpush.bf16.msra.mxu0 0
      %493 = vmatpush.bf16.msra.mxu0 0
      %494 = vmatpush.bf16.msra.mxu0 0
      %495 = vmatpush.bf16.msra.mxu0 0
      %496 = vmatpush.bf16.msra.mxu0 0
      %497 = vmatpush.bf16.msra.mxu0 0
      %498 = vmatpush.bf16.msra.mxu0 %v474
      %499 = vmatpush.bf16.msra.mxu0 %v472
      %500 = vmatmul.bf16.gmra.mxu0 %v481
      %v501 = vpop.f32.mrf.mxu0
      %v502 = vadd.f32 %v438, %v501
      %v503 = vpop.f32.mrf.mxu0
      %v504 = vadd.f32 %v438, %v503
      %505 = vmatmul.bf16.gmra.mxu0 %v484
      %v506 = vpop.f32.mrf.mxu0
      %v507 = vadd.f32 %v438, %v506
      %v508 = vpop.f32.mrf.mxu0
      %v509 = vadd.f32 %v438, %v508
      %510 = vmatmul.bf16.gmra.mxu0 %v487
      %v511 = vpop.f32.mrf.mxu0
      %v512 = vadd.f32 %v438, %v511
      %v513 = vpop.f32.mrf.mxu0
      %v514 = vadd.f32 %v438, %v513
      %515 = vmatmul.bf16.gmra.mxu0 %v490
      %v516 = vpop.f32.mrf.mxu0
      %v517 = vadd.f32 %v438, %v516
      %v518 = vpop.f32.mrf.mxu0
      %519 = vdwg.mxu0
      %520 = vmatpush.bf16.msra.mxu0 0
      %521 = vmatpush.bf16.msra.mxu0 0
      %522 = vmatpush.bf16.msra.mxu0 0
      %523 = vmatpush.bf16.msra.mxu0 0
      %524 = vmatpush.bf16.msra.mxu0 0
      %525 = vmatpush.bf16.msra.mxu0 0
      %526 = vmatpush.bf16.msra.mxu0 %v475
      %527 = vmatpush.bf16.msra.mxu0 %v473
      %528 = vmatmul.bf16.gmra.mxu0 %v481
      %v529 = vpop.f32.mrf.mxu0
      %v530 = vadd.f32 %v439, %v529
      %v531 = vpop.f32.mrf.mxu0
      %v532 = vadd.f32 %v439, %v531
      %533 = vmatmul.bf16.gmra.mxu0 %v484
      %v534 = vpop.f32.mrf.mxu0
      %v535 = vadd.f32 %v439, %v534
      %v536 = vpop.f32.mrf.mxu0
      %v537 = vadd.f32 %v439, %v536
      %538 = vmatmul.bf16.gmra.mxu0 %v487
      %v539 = vpop.f32.mrf.mxu0
      %v540 = vadd.f32 %v439, %v539
      %v541 = vpop.f32.mrf.mxu0
      %v542 = vadd.f32 %v439, %v541
      %543 = vmatmul.bf16.gmra.mxu0 %v490
      %v544 = vpop.f32.mrf.mxu0
      %v545 = vadd.f32 %v439, %v544
      %v546 = vpop.f32.mrf.mxu0
      %547 = vdwg.mxu0
      %v548 = vpack.c.bf16 %v419, %v419
      %v549 = vpack.c.bf16 %v421, %v421
      %v550 = vpack.c.bf16 %v424, %v424
      %v551 = vpack.c.bf16 %v426, %v426
      %v552 = vpack.c.bf16 %v429, %v429
      %v553 = vpack.c.bf16 %v530, %v502
      %v554 = vpack.c.bf16 %v532, %v504
      %v555 = vpack.c.bf16 %v535, %v507
      %v556 = vpack.c.bf16 %v537, %v509
      %v557 = vpack.c.bf16 %v540, %v512
      %v558 = vpack.c.bf16 %v542, %v514
      %v559 = vpack.c.bf16 %v545, %v517
      %v560 = vld [vmem:[%s8] sm:$0xff]
      %v561 = vld [vmem:[%s8 + $0x8] sm:$0xff]
      %v562 = vld [vmem:[%s8 + $0x10] sm:$0xff]
      %v563 = vld [vmem:[%s8 + $0x18] sm:$0xff]
      %v564 = vld [vmem:[%s8 + $0x20] sm:$0xf]
      %v570 = vunpack.c.l.b16 %v548
      %v571 = vunpack.c.l.b16 %v549
      %v572 = vunpack.c.l.b16 %v550
      %v573 = vunpack.c.l.b16 %v551
      %v574 = vunpack.c.l.b16 %v552
      %v575 = vpack.c.b16 %v571, %v570
      %v576 = vpack.c.b16 %v573, %v572
      %v577 = vpack.c.b16 %v574, %v574
      %v585 = vunpack.c.l.b16 %v553
      %v586 = vunpack.c.l.b16 %v554
      %v587 = vunpack.c.l.b16 %v555
      %v588 = vunpack.c.l.b16 %v556
      %v589 = vunpack.c.l.b16 %v557
      %v590 = vunpack.c.l.b16 %v558
      %v591 = vunpack.c.l.b16 %v559
      %v592 = vpack.c.b16 %v586, %v585
      %v593 = vpack.c.b16 %v588, %v587
      %v594 = vpack.c.b16 %v590, %v589
      %v595 = vpack.c.b16 %v591, %v591
      %v597 = vsel %vm399, %v575, 0
      %v600 = vsel %vm399, %v576, 0
      %v603 = vsel %vm399, %v577, 0
      %v606 = vsel %vm399, %v592, 0
      %v609 = vsel %vm399, %v593, 0
      %v612 = vsel %vm399, %v594, 0
      %v615 = vsel %vm399, %v595, 0
      %617 = vmatpush.bf16.xpose.msra.mxu0 0
      %618 = vmatpush.bf16.xpose.msra.mxu0 0
      %619 = vmatpush.bf16.xpose.msra.mxu0 0
      %620 = vmatpush.bf16.xpose.msra.mxu0 0
      %621 = vmatpush.bf16.xpose.msra.mxu0 %v615
      %622 = vmatpush.bf16.xpose.msra.mxu0 %v612
      %623 = vmatpush.bf16.xpose.msra.mxu0 %v609
      %624 = vmatpush.bf16.xpose.msra.mxu0 %v606
      %625 = vmatmul.bf16.gmra.mxu0 %v597
      %v626 = vpop.f32.mrf.mxu0
      %v627 = vadd.f32 %v560, %v626
      %v628 = vpop.f32.mrf.mxu0
      %v629 = vadd.f32 %v561, %v628
      %630 = vmatmul.bf16.gmra.mxu0 %v600
      %v631 = vpop.f32.mrf.mxu0
      %v632 = vadd.f32 %v562, %v631
      %v633 = vpop.f32.mrf.mxu0
      %v634 = vadd.f32 %v563, %v633
      %635 = vmatmul.bf16.gmra.mxu0 %v603
      %v636 = vpop.f32.mrf.mxu0
      %v637 = vadd.f32 %v564, %v636
      %v638 = vpop.f32.mrf.mxu0
      %639 = vdwg.mxu0
      %vm640 = vcmask 424960
      %v641 = vsel %vm640, %v627, -inf
      %642 = vmax.xlane.f32.xlu0 %v641
      %v643 = vpop.xlane.xlu0 %642
      %v644 = vsel %vm640, %v629, -inf
      %645 = vmax.xlane.f32.xlu0 %v644
      %v646 = vpop.xlane.xlu0 %645
      %v647 = vsel %vm640, %v632, -inf
      %648 = vmax.xlane.f32.xlu0 %v647
      %v649 = vpop.xlane.xlu0 %648
      %v650 = vsel %vm640, %v634, -inf
      %651 = vmax.xlane.f32.xlu0 %v650
      %v652 = vpop.xlane.xlu0 %651
      %vm653 = vcmask 420864
      %v654 = vsel %vm653, %v637, -inf
      %655 = vmax.xlane.f32.xlu0 %v654
      %v656 = vpop.xlane.xlu0 %655
      %v657 = vsub.f32 %v627, %v643
      %v658 = vsub.f32 %v629, %v646
      %v659 = vsub.f32 %v632, %v649
      %v660 = vsub.f32 %v634, %v652
      %v661 = vsub.f32 %v637, %v656
      %v662 = vmul.f32 %v657, 1.442695
      %v663 = vpow.pop %v662
      %v664 = vmul.f32 %v658, 1.442695
      %v665 = vpow.pop %v664
      %v666 = vmul.f32 %v659, 1.442695
      %v667 = vpow.pop %v666
      %v668 = vmul.f32 %v660, 1.442695
      %v669 = vpow.pop %v668
      %v670 = vmul.f32 %v661, 1.442695
      %v671 = vpow.pop %v670
      %v672 = vsel %vm640, %v663, 0.0
      %673 = vadd.xlane.f32.xlu0 %v672
      %v674 = vpop.xlane.xlu0 %673
      %v675 = vsel %vm640, %v665, 0.0
      %676 = vadd.xlane.f32.xlu0 %v675
      %v677 = vpop.xlane.xlu0 %676
      %v678 = vsel %vm640, %v667, 0.0
      %679 = vadd.xlane.f32.xlu0 %v678
      %v680 = vpop.xlane.xlu0 %679
      %v681 = vsel %vm640, %v669, 0.0
      %682 = vadd.xlane.f32.xlu0 %v681
      %v683 = vpop.xlane.xlu0 %682
      %v684 = vsel %vm653, %v671, 0.0
      %685 = vadd.xlane.f32.xlu0 %v684
      %v686 = vpop.xlane.xlu0 %685
      %v687 = vpack.c.bf16 %v665, %v663
      %v688 = vpack.c.bf16 %v669, %v667
      %v689 = vpack.c.bf16 %v671, %v671
      %v690 = vunpack.c.h.b16 %v553
      %v691 = vunpack.c.h.b16 %v554
      %v692 = vunpack.c.h.b16 %v555
      %v693 = vunpack.c.h.b16 %v556
      %v694 = vunpack.c.h.b16 %v557
      %v695 = vunpack.c.h.b16 %v558
      %v696 = vunpack.c.h.b16 %v559
      %v697 = vpack.c.b16 %v691, %v690
      %v698 = vpack.c.b16 %v693, %v692
      %v699 = vpack.c.b16 %v695, %v694
      %v700 = vpack.c.b16 %v696, %v696
      %v705 = vsel %vm640, %v687, 0
      %v708 = vsel %vm640, %v688, 0
      %v711 = vsel %vm640, %v689, 0
      %vm713 = vcmask 1041408
      %v715 = vsel %vm713, %v700, 0
      %717 = vmatpush.bf16.msra.mxu0 0
      %718 = vmatpush.bf16.msra.mxu0 0
      %719 = vmatpush.bf16.msra.mxu0 0
      %720 = vmatpush.bf16.msra.mxu0 0
      %721 = vmatpush.bf16.msra.mxu0 %v715
      %722 = vmatpush.bf16.msra.mxu0 %v699
      %723 = vmatpush.bf16.msra.mxu0 %v698
      %724 = vmatpush.bf16.msra.mxu0 %v697
      %725 = vmatmul.bf16.gmra.mxu0 %v705
      %v726 = vpop.f32.mrf.mxu0
      %v727 = vadd.f32 0.0, %v726
      %v728 = vpop.f32.mrf.mxu0
      %v729 = vadd.f32 0.0, %v728
      %730 = vmatmul.bf16.gmra.mxu0 %v708
      %v731 = vpop.f32.mrf.mxu0
      %v732 = vadd.f32 0.0, %v731
      %v733 = vpop.f32.mrf.mxu0
      %v734 = vadd.f32 0.0, %v733
      %735 = vmatmul.bf16.gmra.mxu0 %v711
      %v736 = vpop.f32.mrf.mxu0
      %v737 = vadd.f32 0.0, %v736
      %v738 = vpop.f32.mrf.mxu0
      %739 = vdwg.mxu0
      %v740 = vrcp.pop %v674
      %v741 = vrcp.pop %v677
      %v742 = vrcp.pop %v680
      %v743 = vrcp.pop %v683
      %v744 = vrcp.pop %v686
      %v745 = vmul.f32 %v727, %v740
      %v746 = vmul.f32 %v729, %v741
      %v747 = vmul.f32 %v732, %v742
      %v748 = vmul.f32 %v734, %v743
      %v749 = vmul.f32 %v737, %v744
      %v750 = vpack.c.bf16 %v746, %v745
      %v751 = vpack.c.bf16 %v748, %v747
      %v752 = vpack.c.bf16 %v749, %v749
      %v753 = vld [vmem:[%s6] sm:$0xf]
      %v754 = vld [vmem:[%s6 + $0x4] sm:$0xf]
      %v755 = vld [vmem:[%s6 + $0x8] sm:$0xf]
      %v756 = vld [vmem:[%s6 + $0xc] sm:$0xf]
      %s757 = scalar_lea.vmem %s8, 40
      %v758 = vld [vmem:[%s757] sm:$0xff]
      %v759 = vld [vmem:[%s757 + $0x8] sm:$0xff]
      %v760 = vld [vmem:[%s757 + $0x10] sm:$0xff]
      %v761 = vld [vmem:[%s757 + $0x18] sm:$0xff]
      %v762 = vld [vmem:[%s757 + $0x20] sm:$0xf]
      %763 = vrot.lane.b32.xlu0 %v575, 96
      %v764 = vpop.permute.xlu0 %763
      %765 = vrot.lane.b32.xlu0 %v576, 96
      %v766 = vpop.permute.xlu0 %765
      %767 = vrot.lane.b32.xlu0 %v577, 96
      %v768 = vpop.permute.xlu0 %767
      %769 = vrot.lane.b32.xlu0 %v592, 96
      %v770 = vpop.permute.xlu0 %769
      %771 = vrot.lane.b32.xlu0 %v593, 96
      %v772 = vpop.permute.xlu0 %771
      %773 = vrot.lane.b32.xlu0 %v594, 96
      %v774 = vpop.permute.xlu0 %773
      %775 = vrot.lane.b32.xlu0 %v595, 96
      %v776 = vpop.permute.xlu0 %775
      %v778 = vsel %vm399, %v764, 0
      %v781 = vsel %vm399, %v766, 0
      %v784 = vsel %vm399, %v768, 0
      %v787 = vsel %vm399, %v770, 0
      %v790 = vsel %vm399, %v772, 0
      %v793 = vsel %vm399, %v774, 0
      %v796 = vsel %vm399, %v776, 0
      %798 = vmatpush.bf16.xpose.msra.mxu0 0
      %799 = vmatpush.bf16.xpose.msra.mxu0 0
      %800 = vmatpush.bf16.xpose.msra.mxu0 0
      %801 = vmatpush.bf16.xpose.msra.mxu0 0
      %802 = vmatpush.bf16.xpose.msra.mxu0 %v796
      %803 = vmatpush.bf16.xpose.msra.mxu0 %v793
      %804 = vmatpush.bf16.xpose.msra.mxu0 %v790
      %805 = vmatpush.bf16.xpose.msra.mxu0 %v787
      %806 = vmatmul.bf16.gmra.mxu0 %v778
      %v807 = vpop.f32.mrf.mxu0
      %v808 = vadd.f32 %v758, %v807
      %v809 = vpop.f32.mrf.mxu0
      %v810 = vadd.f32 %v759, %v809
      %811 = vmatmul.bf16.gmra.mxu0 %v781
      %v812 = vpop.f32.mrf.mxu0
      %v813 = vadd.f32 %v760, %v812
      %v814 = vpop.f32.mrf.mxu0
      %v815 = vadd.f32 %v761, %v814
      %816 = vmatmul.bf16.gmra.mxu0 %v784
      %v817 = vpop.f32.mrf.mxu0
      %v818 = vadd.f32 %v762, %v817
      %v819 = vpop.f32.mrf.mxu0
      %820 = vdwg.mxu0
      %v821 = vsel %vm640, %v808, -inf
      %822 = vmax.xlane.f32.xlu0 %v821
      %v823 = vpop.xlane.xlu0 %822
      %v824 = vsel %vm640, %v810, -inf
      %825 = vmax.xlane.f32.xlu0 %v824
      %v826 = vpop.xlane.xlu0 %825
      %v827 = vsel %vm640, %v813, -inf
      %828 = vmax.xlane.f32.xlu0 %v827
      %v829 = vpop.xlane.xlu0 %828
      %v830 = vsel %vm640, %v815, -inf
      %831 = vmax.xlane.f32.xlu0 %v830
      %v832 = vpop.xlane.xlu0 %831
      %v833 = vsel %vm653, %v818, -inf
      %834 = vmax.xlane.f32.xlu0 %v833
      %v835 = vpop.xlane.xlu0 %834
      %v836 = vsub.f32 %v808, %v823
      %v837 = vsub.f32 %v810, %v826
      %v838 = vsub.f32 %v813, %v829
      %v839 = vsub.f32 %v815, %v832
      %v840 = vsub.f32 %v818, %v835
      %v841 = vmul.f32 %v836, 1.442695
      %v842 = vpow.pop %v841
      %v843 = vmul.f32 %v837, 1.442695
      %v844 = vpow.pop %v843
      %v845 = vmul.f32 %v838, 1.442695
      %v846 = vpow.pop %v845
      %v847 = vmul.f32 %v839, 1.442695
      %v848 = vpow.pop %v847
      %v849 = vmul.f32 %v840, 1.442695
      %v850 = vpow.pop %v849
      %v851 = vsel %vm640, %v842, 0.0
      %852 = vadd.xlane.f32.xlu0 %v851
      %v853 = vpop.xlane.xlu0 %852
      %v854 = vsel %vm640, %v844, 0.0
      %855 = vadd.xlane.f32.xlu0 %v854
      %v856 = vpop.xlane.xlu0 %855
      %v857 = vsel %vm640, %v846, 0.0
      %858 = vadd.xlane.f32.xlu0 %v857
      %v859 = vpop.xlane.xlu0 %858
      %v860 = vsel %vm640, %v848, 0.0
      %861 = vadd.xlane.f32.xlu0 %v860
      %v862 = vpop.xlane.xlu0 %861
      %v863 = vsel %vm653, %v850, 0.0
      %864 = vadd.xlane.f32.xlu0 %v863
      %v865 = vpop.xlane.xlu0 %864
      %v866 = vpack.c.bf16 %v844, %v842
      %v867 = vpack.c.bf16 %v848, %v846
      %v868 = vpack.c.bf16 %v850, %v850
      %869 = vrot.lane.b32.xlu0 %v697, 96
      %v870 = vpop.permute.xlu0 %869
      %871 = vrot.lane.b32.xlu0 %v698, 96
      %v872 = vpop.permute.xlu0 %871
      %873 = vrot.lane.b32.xlu0 %v699, 96
      %v874 = vpop.permute.xlu0 %873
      %875 = vrot.lane.b32.xlu0 %v700, 96
      %v876 = vpop.permute.xlu0 %875
      %v881 = vsel %vm640, %v866, 0
      %v884 = vsel %vm640, %v867, 0
      %v887 = vsel %vm640, %v868, 0
      %v890 = vsel %vm713, %v876, 0
      %892 = vmatpush.bf16.msra.mxu0 0
      %893 = vmatpush.bf16.msra.mxu0 0
      %894 = vmatpush.bf16.msra.mxu0 0
      %895 = vmatpush.bf16.msra.mxu0 0
      %896 = vmatpush.bf16.msra.mxu0 %v890
      %897 = vmatpush.bf16.msra.mxu0 %v874
      %898 = vmatpush.bf16.msra.mxu0 %v872
      %899 = vmatpush.bf16.msra.mxu0 %v870
      %900 = vmatmul.bf16.gmra.mxu0 %v881
      %v901 = vpop.f32.mrf.mxu0
      %v902 = vadd.f32 0.0, %v901
      %v903 = vpop.f32.mrf.mxu0
      %v904 = vadd.f32 0.0, %v903
      %905 = vmatmul.bf16.gmra.mxu0 %v884
      %v906 = vpop.f32.mrf.mxu0
      %v907 = vadd.f32 0.0, %v906
      %v908 = vpop.f32.mrf.mxu0
      %v909 = vadd.f32 0.0, %v908
      %910 = vmatmul.bf16.gmra.mxu0 %v887
      %v911 = vpop.f32.mrf.mxu0
      %v912 = vadd.f32 0.0, %v911
      %v913 = vpop.f32.mrf.mxu0
      %914 = vdwg.mxu0
      %v915 = vrcp.pop %v853
      %v916 = vrcp.pop %v856
      %v917 = vrcp.pop %v859
      %v918 = vrcp.pop %v862
      %v919 = vrcp.pop %v865
      %v920 = vmul.f32 %v902, %v915
      %v921 = vmul.f32 %v904, %v916
      %v922 = vmul.f32 %v907, %v917
      %v923 = vmul.f32 %v909, %v918
      %v924 = vmul.f32 %v912, %v919
      %v925 = vpack.c.bf16 %v921, %v920
      %v926 = vpack.c.bf16 %v923, %v922
      %v927 = vpack.c.bf16 %v924, %v924
      %v928 = vld [vmem:[%s6 + $0x10] sm:$0xf]
      %v929 = vld [vmem:[%s6 + $0x14] sm:$0xf]
      %v930 = vld [vmem:[%s6 + $0x18] sm:$0xf]
      %v931 = vld [vmem:[%s6 + $0x1c] sm:$0xf]
      %v936 = vunpack.c.l.b16 %v928
      %v937 = vunpack.c.l.b16 %v929
      %v938 = vunpack.c.l.b16 %v930
      %v939 = vunpack.c.l.b16 %v931
      %v940 = vpack.c.b16 %v937, %v936
      %v941 = vpack.c.b16 %v939, %v938
      %v945 = vsel %vm399, %v925, 0
      %v948 = vsel %vm399, %v926, 0
      %v951 = vsel %vm399, %v927, 0
      %953 = vmatpush.bf16.msra.mxu0 0
      %954 = vmatpush.bf16.msra.mxu0 0
      %955 = vmatpush.bf16.msra.mxu0 0
      %956 = vmatpush.bf16.msra.mxu0 0
      %957 = vmatpush.bf16.msra.mxu0 0
      %958 = vmatpush.bf16.msra.mxu0 0
      %959 = vmatpush.bf16.msra.mxu0 %v941
      %960 = vmatpush.bf16.msra.mxu0 %v940
      %961 = vmatmul.bf16.gmra.mxu0 %v945
      %v962 = vpop.f32.mrf.mxu0
      %v963 = vadd.f32 0.0, %v962
      %v964 = vpop.f32.mrf.mxu0
      %v965 = vadd.f32 0.0, %v964
      %966 = vmatmul.bf16.gmra.mxu0 %v948
      %v967 = vpop.f32.mrf.mxu0
      %v968 = vadd.f32 0.0, %v967
      %v969 = vpop.f32.mrf.mxu0
      %v970 = vadd.f32 0.0, %v969
      %971 = vmatmul.bf16.gmra.mxu0 %v951
      %v972 = vpop.f32.mrf.mxu0
      %v973 = vadd.f32 0.0, %v972
      %v974 = vpop.f32.mrf.mxu0
      %975 = vdwg.mxu0
      %v980 = vunpack.c.l.b16 %v753
      %v981 = vunpack.c.l.b16 %v754
      %v982 = vunpack.c.l.b16 %v755
      %v983 = vunpack.c.l.b16 %v756
      %v984 = vpack.c.b16 %v981, %v980
      %v985 = vpack.c.b16 %v983, %v982
      %v989 = vsel %vm399, %v750, 0
      %v992 = vsel %vm399, %v751, 0
      %v995 = vsel %vm399, %v752, 0
      %997 = vmatpush.bf16.msra.mxu0 0
      %998 = vmatpush.bf16.msra.mxu0 0
      %999 = vmatpush.bf16.msra.mxu0 0
      %1000 = vmatpush.bf16.msra.mxu0 0
      %1001 = vmatpush.bf16.msra.mxu0 0
      %1002 = vmatpush.bf16.msra.mxu0 0
      %1003 = vmatpush.bf16.msra.mxu0 %v985
      %1004 = vmatpush.bf16.msra.mxu0 %v984
      %1005 = vmatmul.bf16.gmra.mxu0 %v989
      %v1006 = vpop.f32.mrf.mxu0
      %v1007 = vadd.f32 %v963, %v1006
      %v1008 = vpop.f32.mrf.mxu0
      %v1009 = vadd.f32 %v965, %v1008
      %1010 = vmatmul.bf16.gmra.mxu0 %v992
      %v1011 = vpop.f32.mrf.mxu0
      %v1012 = vadd.f32 %v968, %v1011
      %v1013 = vpop.f32.mrf.mxu0
      %v1014 = vadd.f32 %v970, %v1013
      %1015 = vmatmul.bf16.gmra.mxu0 %v995
      %v1016 = vpop.f32.mrf.mxu0
      %v1017 = vadd.f32 %v973, %v1016
      %v1018 = vpop.f32.mrf.mxu0
      %1019 = vdwg.mxu0
      %s1020 = scalar_lea.vmem %s8, 80
      %v1021 = vld [vmem:[%s1020] sm:$0xff]
      %v1022 = vld [vmem:[%s1020 + $0x8] sm:$0xff]
      %v1023 = vld [vmem:[%s1020 + $0x10] sm:$0xff]
      %v1024 = vld [vmem:[%s1020 + $0x18] sm:$0xff]
      %v1025 = vld [vmem:[%s1020 + $0x20] sm:$0xf]
      %1026 = vrot.lane.b32.xlu0 %v575, 64
      %v1027 = vpop.permute.xlu0 %1026
      %1028 = vrot.lane.b32.xlu0 %v576, 64
      %v1029 = vpop.permute.xlu0 %1028
      %1030 = vrot.lane.b32.xlu0 %v577, 64
      %v1031 = vpop.permute.xlu0 %1030
      %1032 = vrot.lane.b32.xlu0 %v592, 64
      %v1033 = vpop.permute.xlu0 %1032
      %1034 = vrot.lane.b32.xlu0 %v593, 64
      %v1035 = vpop.permute.xlu0 %1034
      %1036 = vrot.lane.b32.xlu0 %v594, 64
      %v1037 = vpop.permute.xlu0 %1036
      %1038 = vrot.lane.b32.xlu0 %v595, 64
      %v1039 = vpop.permute.xlu0 %1038
      %v1041 = vsel %vm399, %v1027, 0
      %v1044 = vsel %vm399, %v1029, 0
      %v1047 = vsel %vm399, %v1031, 0
      %v1050 = vsel %vm399, %v1033, 0
      %v1053 = vsel %vm399, %v1035, 0
      %v1056 = vsel %vm399, %v1037, 0
      %v1059 = vsel %vm399, %v1039, 0
      %1061 = vmatpush.bf16.xpose.msra.mxu0 0
      %1062 = vmatpush.bf16.xpose.msra.mxu0 0
      %1063 = vmatpush.bf16.xpose.msra.mxu0 0
      %1064 = vmatpush.bf16.xpose.msra.mxu0 0
      %1065 = vmatpush.bf16.xpose.msra.mxu0 %v1059
      %1066 = vmatpush.bf16.xpose.msra.mxu0 %v1056
      %1067 = vmatpush.bf16.xpose.msra.mxu0 %v1053
      %1068 = vmatpush.bf16.xpose.msra.mxu0 %v1050
      %1069 = vmatmul.bf16.gmra.mxu0 %v1041
      %v1070 = vpop.f32.mrf.mxu0
      %v1071 = vadd.f32 %v1021, %v1070
      %v1072 = vpop.f32.mrf.mxu0
      %v1073 = vadd.f32 %v1022, %v1072
      %1074 = vmatmul.bf16.gmra.mxu0 %v1044
      %v1075 = vpop.f32.mrf.mxu0
      %v1076 = vadd.f32 %v1023, %v1075
      %v1077 = vpop.f32.mrf.mxu0
      %v1078 = vadd.f32 %v1024, %v1077
      %1079 = vmatmul.bf16.gmra.mxu0 %v1047
      %v1080 = vpop.f32.mrf.mxu0
      %v1081 = vadd.f32 %v1025, %v1080
      %v1082 = vpop.f32.mrf.mxu0
      %1083 = vdwg.mxu0
      %v1084 = vsel %vm640, %v1071, -inf
      %1085 = vmax.xlane.f32.xlu0 %v1084
      %v1086 = vpop.xlane.xlu0 %1085
      %v1087 = vsel %vm640, %v1073, -inf
      %1088 = vmax.xlane.f32.xlu0 %v1087
      %v1089 = vpop.xlane.xlu0 %1088
      %v1090 = vsel %vm640, %v1076, -inf
      %1091 = vmax.xlane.f32.xlu0 %v1090
      %v1092 = vpop.xlane.xlu0 %1091
      %v1093 = vsel %vm640, %v1078, -inf
      %1094 = vmax.xlane.f32.xlu0 %v1093
      %v1095 = vpop.xlane.xlu0 %1094
      %v1096 = vsel %vm653, %v1081, -inf
      %1097 = vmax.xlane.f32.xlu0 %v1096
      %v1098 = vpop.xlane.xlu0 %1097
      %v1099 = vsub.f32 %v1071, %v1086
      %v1100 = vsub.f32 %v1073, %v1089
      %v1101 = vsub.f32 %v1076, %v1092
      %v1102 = vsub.f32 %v1078, %v1095
      %v1103 = vsub.f32 %v1081, %v1098
      %v1104 = vmul.f32 %v1099, 1.442695
      %v1105 = vpow.pop %v1104
      %v1106 = vmul.f32 %v1100, 1.442695
      %v1107 = vpow.pop %v1106
      %v1108 = vmul.f32 %v1101, 1.442695
      %v1109 = vpow.pop %v1108
      %v1110 = vmul.f32 %v1102, 1.442695
      %v1111 = vpow.pop %v1110
      %v1112 = vmul.f32 %v1103, 1.442695
      %v1113 = vpow.pop %v1112
      %v1114 = vsel %vm640, %v1105, 0.0
      %1115 = vadd.xlane.f32.xlu0 %v1114
      %v1116 = vpop.xlane.xlu0 %1115
      %v1117 = vsel %vm640, %v1107, 0.0
      %1118 = vadd.xlane.f32.xlu0 %v1117
      %v1119 = vpop.xlane.xlu0 %1118
      %v1120 = vsel %vm640, %v1109, 0.0
      %1121 = vadd.xlane.f32.xlu0 %v1120
      %v1122 = vpop.xlane.xlu0 %1121
      %v1123 = vsel %vm640, %v1111, 0.0
      %1124 = vadd.xlane.f32.xlu0 %v1123
      %v1125 = vpop.xlane.xlu0 %1124
      %v1126 = vsel %vm653, %v1113, 0.0
      %1127 = vadd.xlane.f32.xlu0 %v1126
      %v1128 = vpop.xlane.xlu0 %1127
      %v1129 = vpack.c.bf16 %v1107, %v1105
      %v1130 = vpack.c.bf16 %v1111, %v1109
      %v1131 = vpack.c.bf16 %v1113, %v1113
      %1132 = vrot.lane.b32.xlu0 %v697, 64
      %v1133 = vpop.permute.xlu0 %1132
      %1134 = vrot.lane.b32.xlu0 %v698, 64
      %v1135 = vpop.permute.xlu0 %1134
      %1136 = vrot.lane.b32.xlu0 %v699, 64
      %v1137 = vpop.permute.xlu0 %1136
      %1138 = vrot.lane.b32.xlu0 %v700, 64
      %v1139 = vpop.permute.xlu0 %1138
      %v1144 = vsel %vm640, %v1129, 0
      %v1147 = vsel %vm640, %v1130, 0
      %v1150 = vsel %vm640, %v1131, 0
      %v1153 = vsel %vm713, %v1139, 0
      %1155 = vmatpush.bf16.msra.mxu0 0
      %1156 = vmatpush.bf16.msra.mxu0 0
      %1157 = vmatpush.bf16.msra.mxu0 0
      %1158 = vmatpush.bf16.msra.mxu0 0
      %1159 = vmatpush.bf16.msra.mxu0 %v1153
      %1160 = vmatpush.bf16.msra.mxu0 %v1137
      %1161 = vmatpush.bf16.msra.mxu0 %v1135
      %1162 = vmatpush.bf16.msra.mxu0 %v1133
      %1163 = vmatmul.bf16.gmra.mxu0 %v1144
      %v1164 = vpop.f32.mrf.mxu0
      %v1165 = vadd.f32 0.0, %v1164
      %v1166 = vpop.f32.mrf.mxu0
      %v1167 = vadd.f32 0.0, %v1166
      %1168 = vmatmul.bf16.gmra.mxu0 %v1147
      %v1169 = vpop.f32.mrf.mxu0
      %v1170 = vadd.f32 0.0, %v1169
      %v1171 = vpop.f32.mrf.mxu0
      %v1172 = vadd.f32 0.0, %v1171
      %1173 = vmatmul.bf16.gmra.mxu0 %v1150
      %v1174 = vpop.f32.mrf.mxu0
      %v1175 = vadd.f32 0.0, %v1174
      %v1176 = vpop.f32.mrf.mxu0
      %1177 = vdwg.mxu0
      %v1178 = vrcp.pop %v1116
      %v1179 = vrcp.pop %v1119
      %v1180 = vrcp.pop %v1122
      %v1181 = vrcp.pop %v1125
      %v1182 = vrcp.pop %v1128
      %v1183 = vmul.f32 %v1165, %v1178
      %v1184 = vmul.f32 %v1167, %v1179
      %v1185 = vmul.f32 %v1170, %v1180
      %v1186 = vmul.f32 %v1172, %v1181
      %v1187 = vmul.f32 %v1175, %v1182
      %v1188 = vpack.c.bf16 %v1184, %v1183
      %v1189 = vpack.c.bf16 %v1186, %v1185
      %v1190 = vpack.c.bf16 %v1187, %v1187
      %v1191 = vld [vmem:[%s6 + $0x20] sm:$0xf]
      %v1192 = vld [vmem:[%s6 + $0x24] sm:$0xf]
      %v1193 = vld [vmem:[%s6 + $0x28] sm:$0xf]
      %v1194 = vld [vmem:[%s6 + $0x2c] sm:$0xf]
      %v1199 = vunpack.c.l.b16 %v1191
      %v1200 = vunpack.c.l.b16 %v1192
      %v1201 = vunpack.c.l.b16 %v1193
      %v1202 = vunpack.c.l.b16 %v1194
      %v1203 = vpack.c.b16 %v1200, %v1199
      %v1204 = vpack.c.b16 %v1202, %v1201
      %v1208 = vsel %vm399, %v1188, 0
      %v1211 = vsel %vm399, %v1189, 0
      %v1214 = vsel %vm399, %v1190, 0
      %1216 = vmatpush.bf16.msra.mxu0 0
      %1217 = vmatpush.bf16.msra.mxu0 0
      %1218 = vmatpush.bf16.msra.mxu0 0
      %1219 = vmatpush.bf16.msra.mxu0 0
      %1220 = vmatpush.bf16.msra.mxu0 0
      %1221 = vmatpush.bf16.msra.mxu0 0
      %1222 = vmatpush.bf16.msra.mxu0 %v1204
      %1223 = vmatpush.bf16.msra.mxu0 %v1203
      %1224 = vmatmul.bf16.gmra.mxu0 %v1208
      %v1225 = vpop.f32.mrf.mxu0
      %v1226 = vadd.f32 0.0, %v1225
      %v1227 = vpop.f32.mrf.mxu0
      %v1228 = vadd.f32 0.0, %v1227
      %1229 = vmatmul.bf16.gmra.mxu0 %v1211
      %v1230 = vpop.f32.mrf.mxu0
      %v1231 = vadd.f32 0.0, %v1230
      %v1232 = vpop.f32.mrf.mxu0
      %v1233 = vadd.f32 0.0, %v1232
      %1234 = vmatmul.bf16.gmra.mxu0 %v1214
      %v1235 = vpop.f32.mrf.mxu0
      %v1236 = vadd.f32 0.0, %v1235
      %v1237 = vpop.f32.mrf.mxu0
      %1238 = vdwg.mxu0
      %v1239 = vadd.f32 %v1007, %v1226
      %v1240 = vadd.f32 %v1009, %v1228
      %v1241 = vadd.f32 %v1012, %v1231
      %v1242 = vadd.f32 %v1014, %v1233
      %v1243 = vadd.f32 %v1017, %v1236
      %s1244 = scalar_lea.vmem %s8, 120
      %v1245 = vld [vmem:[%s1244] sm:$0xff]
      %v1246 = vld [vmem:[%s1244 + $0x8] sm:$0xff]
      %v1247 = vld [vmem:[%s1244 + $0x10] sm:$0xff]
      %v1248 = vld [vmem:[%s1244 + $0x18] sm:$0xff]
      %v1249 = vld [vmem:[%s1244 + $0x20] sm:$0xf]
      %1250 = vrot.lane.b32.xlu0 %v575, 32
      %v1251 = vpop.permute.xlu0 %1250
      %1252 = vrot.lane.b32.xlu0 %v576, 32
      %v1253 = vpop.permute.xlu0 %1252
      %1254 = vrot.lane.b32.xlu0 %v577, 32
      %v1255 = vpop.permute.xlu0 %1254
      %1256 = vrot.lane.b32.xlu0 %v592, 32
      %v1257 = vpop.permute.xlu0 %1256
      %1258 = vrot.lane.b32.xlu0 %v593, 32
      %v1259 = vpop.permute.xlu0 %1258
      %1260 = vrot.lane.b32.xlu0 %v594, 32
      %v1261 = vpop.permute.xlu0 %1260
      %1262 = vrot.lane.b32.xlu0 %v595, 32
      %v1263 = vpop.permute.xlu0 %1262
      %v1265 = vsel %vm399, %v1251, 0
      %v1268 = vsel %vm399, %v1253, 0
      %v1271 = vsel %vm399, %v1255, 0
      %v1274 = vsel %vm399, %v1257, 0
      %v1277 = vsel %vm399, %v1259, 0
      %v1280 = vsel %vm399, %v1261, 0
      %v1283 = vsel %vm399, %v1263, 0
      %1285 = vmatpush.bf16.xpose.msra.mxu0 0
      %1286 = vmatpush.bf16.xpose.msra.mxu0 0
      %1287 = vmatpush.bf16.xpose.msra.mxu0 0
      %1288 = vmatpush.bf16.xpose.msra.mxu0 0
      %1289 = vmatpush.bf16.xpose.msra.mxu0 %v1283
      %1290 = vmatpush.bf16.xpose.msra.mxu0 %v1280
      %1291 = vmatpush.bf16.xpose.msra.mxu0 %v1277
      %1292 = vmatpush.bf16.xpose.msra.mxu0 %v1274
      %1293 = vmatmul.bf16.gmra.mxu0 %v1265
      %v1294 = vpop.f32.mrf.mxu0
      %v1295 = vadd.f32 %v1245, %v1294
      %v1296 = vpop.f32.mrf.mxu0
      %v1297 = vadd.f32 %v1246, %v1296
      %1298 = vmatmul.bf16.gmra.mxu0 %v1268
      %v1299 = vpop.f32.mrf.mxu0
      %v1300 = vadd.f32 %v1247, %v1299
      %v1301 = vpop.f32.mrf.mxu0
      %v1302 = vadd.f32 %v1248, %v1301
      %1303 = vmatmul.bf16.gmra.mxu0 %v1271
      %v1304 = vpop.f32.mrf.mxu0
      %v1305 = vadd.f32 %v1249, %v1304
      %v1306 = vpop.f32.mrf.mxu0
      %1307 = vdwg.mxu0
      %v1308 = vsel %vm640, %v1295, -inf
      %1309 = vmax.xlane.f32.xlu0 %v1308
      %v1310 = vpop.xlane.xlu0 %1309
      %v1311 = vsel %vm640, %v1297, -inf
      %1312 = vmax.xlane.f32.xlu0 %v1311
      %v1313 = vpop.xlane.xlu0 %1312
      %v1314 = vsel %vm640, %v1300, -inf
      %1315 = vmax.xlane.f32.xlu0 %v1314
      %v1316 = vpop.xlane.xlu0 %1315
      %v1317 = vsel %vm640, %v1302, -inf
      %1318 = vmax.xlane.f32.xlu0 %v1317
      %v1319 = vpop.xlane.xlu0 %1318
      %v1320 = vsel %vm653, %v1305, -inf
      %1321 = vmax.xlane.f32.xlu0 %v1320
      %v1322 = vpop.xlane.xlu0 %1321
      %v1323 = vsub.f32 %v1295, %v1310
      %v1324 = vsub.f32 %v1297, %v1313
      %v1325 = vsub.f32 %v1300, %v1316
      %v1326 = vsub.f32 %v1302, %v1319
      %v1327 = vsub.f32 %v1305, %v1322
      %v1328 = vmul.f32 %v1323, 1.442695
      %v1329 = vpow.pop %v1328
      %v1330 = vmul.f32 %v1324, 1.442695
      %v1331 = vpow.pop %v1330
      %v1332 = vmul.f32 %v1325, 1.442695
      %v1333 = vpow.pop %v1332
      %v1334 = vmul.f32 %v1326, 1.442695
      %v1335 = vpow.pop %v1334
      %v1336 = vmul.f32 %v1327, 1.442695
      %v1337 = vpow.pop %v1336
      %v1338 = vsel %vm640, %v1329, 0.0
      %1339 = vadd.xlane.f32.xlu0 %v1338
      %v1340 = vpop.xlane.xlu0 %1339
      %v1341 = vsel %vm640, %v1331, 0.0
      %1342 = vadd.xlane.f32.xlu0 %v1341
      %v1343 = vpop.xlane.xlu0 %1342
      %v1344 = vsel %vm640, %v1333, 0.0
      %1345 = vadd.xlane.f32.xlu0 %v1344
      %v1346 = vpop.xlane.xlu0 %1345
      %v1347 = vsel %vm640, %v1335, 0.0
      %1348 = vadd.xlane.f32.xlu0 %v1347
      %v1349 = vpop.xlane.xlu0 %1348
      %v1350 = vsel %vm653, %v1337, 0.0
      %1351 = vadd.xlane.f32.xlu0 %v1350
      %v1352 = vpop.xlane.xlu0 %1351
      %v1353 = vpack.c.bf16 %v1331, %v1329
      %v1354 = vpack.c.bf16 %v1335, %v1333
      %v1355 = vpack.c.bf16 %v1337, %v1337
      %1356 = vrot.lane.b32.xlu0 %v697, 32
      %v1357 = vpop.permute.xlu0 %1356
      %1358 = vrot.lane.b32.xlu0 %v698, 32
      %v1359 = vpop.permute.xlu0 %1358
      %1360 = vrot.lane.b32.xlu0 %v699, 32
      %v1361 = vpop.permute.xlu0 %1360
      %1362 = vrot.lane.b32.xlu0 %v700, 32
      %v1363 = vpop.permute.xlu0 %1362
      %v1368 = vsel %vm640, %v1353, 0
      %v1371 = vsel %vm640, %v1354, 0
      %v1374 = vsel %vm640, %v1355, 0
      %v1377 = vsel %vm713, %v1363, 0
      %1379 = vmatpush.bf16.msra.mxu0 0
      %1380 = vmatpush.bf16.msra.mxu0 0
      %1381 = vmatpush.bf16.msra.mxu0 0
      %1382 = vmatpush.bf16.msra.mxu0 0
      %1383 = vmatpush.bf16.msra.mxu0 %v1377
      %1384 = vmatpush.bf16.msra.mxu0 %v1361
      %1385 = vmatpush.bf16.msra.mxu0 %v1359
      %1386 = vmatpush.bf16.msra.mxu0 %v1357
      %1387 = vmatmul.bf16.gmra.mxu0 %v1368
      %v1388 = vpop.f32.mrf.mxu0
      %v1389 = vadd.f32 0.0, %v1388
      %v1390 = vpop.f32.mrf.mxu0
      %v1391 = vadd.f32 0.0, %v1390
      %1392 = vmatmul.bf16.gmra.mxu0 %v1371
      %v1393 = vpop.f32.mrf.mxu0
      %v1394 = vadd.f32 0.0, %v1393
      %v1395 = vpop.f32.mrf.mxu0
      %v1396 = vadd.f32 0.0, %v1395
      %1397 = vmatmul.bf16.gmra.mxu0 %v1374
      %v1398 = vpop.f32.mrf.mxu0
      %v1399 = vadd.f32 0.0, %v1398
      %v1400 = vpop.f32.mrf.mxu0
      %1401 = vdwg.mxu0
      %v1402 = vrcp.pop %v1340
      %v1403 = vrcp.pop %v1343
      %v1404 = vrcp.pop %v1346
      %v1405 = vrcp.pop %v1349
      %v1406 = vrcp.pop %v1352
      %v1407 = vmul.f32 %v1389, %v1402
      %v1408 = vmul.f32 %v1391, %v1403
      %v1409 = vmul.f32 %v1394, %v1404
      %v1410 = vmul.f32 %v1396, %v1405
      %v1411 = vmul.f32 %v1399, %v1406
      %v1412 = vpack.c.bf16 %v1408, %v1407
      %v1413 = vpack.c.bf16 %v1410, %v1409
      %v1414 = vpack.c.bf16 %v1411, %v1411
      %v1415 = vld [vmem:[%s6 + $0x30] sm:$0xf]
      %v1416 = vld [vmem:[%s6 + $0x34] sm:$0xf]
      %v1417 = vld [vmem:[%s6 + $0x38] sm:$0xf]
      %v1418 = vld [vmem:[%s6 + $0x3c] sm:$0xf]
      %v1423 = vunpack.c.l.b16 %v1415
      %v1424 = vunpack.c.l.b16 %v1416
      %v1425 = vunpack.c.l.b16 %v1417
      %v1426 = vunpack.c.l.b16 %v1418
      %v1427 = vpack.c.b16 %v1424, %v1423
      %v1428 = vpack.c.b16 %v1426, %v1425
      %v1432 = vsel %vm399, %v1412, 0
      %v1435 = vsel %vm399, %v1413, 0
      %v1438 = vsel %vm399, %v1414, 0
      %1440 = vmatpush.bf16.msra.mxu0 0
      %1441 = vmatpush.bf16.msra.mxu0 0
      %1442 = vmatpush.bf16.msra.mxu0 0
      %1443 = vmatpush.bf16.msra.mxu0 0
      %1444 = vmatpush.bf16.msra.mxu0 0
      %1445 = vmatpush.bf16.msra.mxu0 0
      %1446 = vmatpush.bf16.msra.mxu0 %v1428
      %1447 = vmatpush.bf16.msra.mxu0 %v1427
      %1448 = vmatmul.bf16.gmra.mxu0 %v1432
      %v1449 = vpop.f32.mrf.mxu0
      %v1450 = vadd.f32 0.0, %v1449
      %v1451 = vpop.f32.mrf.mxu0
      %v1452 = vadd.f32 0.0, %v1451
      %1453 = vmatmul.bf16.gmra.mxu0 %v1435
      %v1454 = vpop.f32.mrf.mxu0
      %v1455 = vadd.f32 0.0, %v1454
      %v1456 = vpop.f32.mrf.mxu0
      %v1457 = vadd.f32 0.0, %v1456
      %1458 = vmatmul.bf16.gmra.mxu0 %v1438
      %v1459 = vpop.f32.mrf.mxu0
      %v1460 = vadd.f32 0.0, %v1459
      %v1461 = vpop.f32.mrf.mxu0
      %1462 = vdwg.mxu0
      %v1463 = vadd.f32 %v1239, %v1450
      %v1464 = vadd.f32 %v1240, %v1452
      %v1465 = vadd.f32 %v1241, %v1455
      %v1466 = vadd.f32 %v1242, %v1457
      %v1467 = vadd.f32 %v1243, %v1460
      %v1468 = vld [vmem:[%s7] sm:$0x1]
      %v1470 = vperm.slane %v1468, 0
      %v1472 = vadd.f32 %v1463, %v1470
      %v1473 = vadd.f32 %v1464, %v1470
      %v1474 = vadd.f32 %v1465, %v1470
      %v1475 = vadd.f32 %v1466, %v1470
      %v1476 = vadd.f32 %v1467, %v1470
      %v1477 = vpack.c.bf16 %v1472, %v1472
      %v1478 = vpack.c.bf16 %v1473, %v1473
      %v1479 = vpack.c.bf16 %v1474, %v1474
      %v1480 = vpack.c.bf16 %v1475, %v1475
      %v1481 = vpack.c.bf16 %v1476, %v1476
      %vm1482 = vcmask 257024
      %1483 = vst.msk [vmem:[%s352] sm:$0xf] %vm1482, %v1477
      %1484 = vst.msk [vmem:[%s352 + $0x4] sm:$0xf] %vm1482, %v1478
      %1485 = vst.msk [vmem:[%s352 + $0x8] sm:$0xf] %vm1482, %v1479
      %1486 = vst.msk [vmem:[%s352 + $0xc] sm:$0xf] %vm1482, %v1480
      %vm1487 = vcmask 254976
      %1488 = vst.msk [vmem:[%s352 + $0x10] sm:$0x3] %vm1487, %v1481
      %p1489 = scmp.lt.s32.totalorder %s20, 1
      %s1490 = scalar_select %p1489, %s20, 1
      %s1491 = smul.addr %s1490, 5
      %s1492 = smul.addr %s1491, 4
      %s1493 = scalar_lea.vmem %s9, %s1492
      // Predicated region
      $region57: #{tpu_custom_call.1} parent=55 // pred_check
        %p1494 = pneg %p237
      $region58: #{tpu_custom_call.1} parent=55 // pred_check_branch
        %1496 = sbr.rel (%p1494) target = $region60
      $region59: #{tpu_custom_call.1} parent=55 // pred_region
        _
      $region60: #{tpu_custom_call.1} parent=55 // pred_fallthru
        _
    $region56: #{tpu_custom_call.1} parent=5 // pred_fallthru
      _
    %p1497 = scmp.le.s32.totalorder 2, %s15
    // Predicated region
    $region61: #{tpu_custom_call.1} parent=5 // pred_check
      %p1498 = pneg %p1497
    $region62: #{tpu_custom_call.1} parent=5 // pred_check_branch
      %1500 = sbr.rel (%p1498) target = $region64
    $region63: #{tpu_custom_call.1} parent=5 // pred_region
      %s1501 = ssub.s32 %s15, 2
      // Predicated region
      $region65: #{tpu_custom_call.1} parent=63 // pred_check
        %p1502 = pneg %p243
      $region66: #{tpu_custom_call.1} parent=63 // pred_check_branch
        %1504 = sbr.rel (%p1502) target = $region68
      $region67: #{tpu_custom_call.1} parent=63 // pred_region
        %p1505 = scmp.lt.s32.totalorder %s21, 1
        %s1506 = scalar_select %p1505, %s21, 1
        %s1507 = smul.addr %s1506, 5
        %s1508 = smul.addr %s1507, 4
        %s1509 = scalar_lea.vmem %s9, %s1508
      $region68: #{tpu_custom_call.1} parent=63 // pred_fallthru
        _
    $region64: #{tpu_custom_call.1} parent=5 // pred_fallthru
      _
  $region6: #{tpu_custom_call.1} parent=0 // loop_footer
    %s19 = sadd.s32 1, %s15
  $region7: #{tpu_custom_call.1} parent=0 // loop_footer_branch
    %14 = sbr.rel target = $region3
  $region8: #{tpu_custom_call.1} parent=0 // loop_exit
    _

</llo_original>
